<compile_context>
chip_gen: v7x
topology: tpu7x:2x2x1
jax: 0.10.0
libtpu: 0.0.40
codegen_flags: <defaults>
</compile_context>

<pallas_src>
import math
import jax
import jax.numpy as jnp
from jax.experimental import pallas as pl
from jax.experimental.pallas import tpu as pltpu

# ---- tiny T5-small-like config (structure identical, sizes shrunk) ----
B, S, D = 2, 8, 32          # batch, seq, d_model
H, DK = 4, 8                # n_heads, d_kv  (H*DK == inner dim)
DFF = 64                    # feed-forward dim
L = 2                       # encoder layers
NUM_BUCKETS = 32
MAX_DIST = 128
EPS = 1e-6                  # T5LayerNorm eps
N = B * S                   # flattened token count (batch folded into rows)
NEG_INF = -1e9              # cross-batch attention mask value


def _rmsnorm(x, w):
    # T5LayerNorm: RMS norm, no mean subtraction, no bias (f32 math).
    var = jnp.mean(x * x, axis=-1, keepdims=True)
    return (x * jax.lax.rsqrt(var + EPS)) * w


# --------------------------------------------------------------------------------------
# Kernel: single invocation, whole model, all tokens at once.
# --------------------------------------------------------------------------------------
def t5_disc_kernel(z_ref, bias_ref, m_ref, vo_ref, lns_ref, wi_ref, wff_ref,
                   linw_ref, linb_ref, out_ref):
    x = z_ref[...]                                    # (N, D) f32 residual stream
    bias = bias_ref[...]                              # (H, N, N) f32 (pos bias + batch mask)

    for l in range(L):                                # static unroll (L = 2)
        # ------------------- self-attention block -------------------
        y = _rmsnorm(x, lns_ref[l])                   # f32 norm math
        yb = jnp.broadcast_to(y.astype(jnp.bfloat16), (H, N, D))      # bf16 MXU operand
        # scores[h] = y @ (Wq_h Wk_h^T) @ y^T + bias[h]   (T5: NO 1/sqrt(dk) scaling)
        t = jnp.einsum('hnd,hde->hne', yb, m_ref[l],
                       preferred_element_type=jnp.float32)             # (H, N, D)
        s = jnp.einsum('hne,hme->hnm', t.astype(jnp.bfloat16), yb,
                       preferred_element_type=jnp.float32) + bias      # (H, N, N)
        # f32 softmax; denominator via EUP approx reciprocal
        s = s - jnp.max(s, axis=-1, keepdims=True)
        p = jnp.exp(s)
        p = p * pl.reciprocal(jnp.sum(p, axis=-1, keepdims=True), approx=True)
        # attn_out = sum_h softmax[h] @ y @ (Wv_h Wo_h)
        c = jnp.einsum('hnm,hmd->hnd', p.astype(jnp.bfloat16), yb,
                       preferred_element_type=jnp.float32)             # (H, N, D)
        a = jnp.einsum('hnd,hde->hne', c.astype(jnp.bfloat16), vo_ref[l],
                       preferred_element_type=jnp.float32)             # (H, N, D)
        x = x + jnp.sum(a, axis=0)                    # residual (dropout = identity, eval)

        # ------------------- feed-forward block (DenseReluDense) -------------------
        y2 = _rmsnorm(x, lns_ref[L + l])
        h1 = jnp.maximum(
            jnp.dot(y2.astype(jnp.bfloat16), wi_ref[l],
                    preferred_element_type=jnp.float32), 0.0)          # (N, DFF)
        x = x + jnp.dot(h1.astype(jnp.bfloat16), wff_ref[l],
                        preferred_element_type=jnp.float32)            # residual

    # final encoder RMSNorm + classifier head (trivial size -> keep f32)
    xf = _rmsnorm(x, lns_ref[2 * L])
    logits = jnp.einsum('od,nd->on', linw_ref[...], xf,
                        preferred_element_type=jnp.float32)            # (1, N) lane-dense
    out_ref[...] = logits + linb_ref[0, 0]            # scalar bias from SMEM


# --------------------------------------------------------------------------------------
# Wrapper-side (plain JAX, runs once): position-bias gather, weight repacking.
# --------------------------------------------------------------------------------------
def _relative_position_bucket(rel_pos, num_buckets=NUM_BUCKETS, max_distance=MAX_DIST):
    nb = num_buckets // 2
    rel_buckets = (rel_pos > 0).astype(jnp.int32) * nb
    rel_pos = jnp.abs(rel_pos)
    max_exact = nb // 2
    is_small = rel_pos < max_exact
    safe = jnp.maximum(rel_pos, 1).astype(jnp.float32)
    rel_if_large = max_exact + (
        jnp.log(safe / max_exact) / math.log(max_distance / max_exact) * (nb - max_exact)
    ).astype(jnp.int32)
    rel_if_large = jnp.minimum(rel_if_large, nb - 1)
    return rel_buckets + jnp.where(is_small, rel_pos, rel_if_large)


def make_position_bias(rel_bias_table):
    # rel_bias_table: (NUM_BUCKETS, H) — embedding-table gather is glue, done in JAX.
    ctx = jnp.arange(S)[:, None]
    mem = jnp.arange(S)[None, :]
    buckets = _relative_position_bucket(mem - ctx)              # (S, S)
    bias = rel_bias_table[buckets]                              # (S, S, H)
    return jnp.transpose(bias, (2, 0, 1)).astype(jnp.float32)   # (H, S, S)


def _block_bias(rel_bias_table):
    """Shared rel-pos bias tiled over the flattened (B*S) axis + cross-batch -1e9 mask."""
    pb = make_position_bias(rel_bias_table)                                   # (H, S, S)
    same = jnp.kron(jnp.eye(B, dtype=jnp.float32), jnp.ones((S, S), jnp.float32))  # (N,N)
    tiled = jnp.tile(pb, (1, B, B))                                           # (H, N, N)
    return tiled * same[None] + (1.0 - same[None]) * NEG_INF


def _pack_params(params):
    """One-time weight layout transform / per-head pre-multiplication (exact math)."""
    wq = params["wq"].reshape(L, D, H, DK).transpose(0, 2, 1, 3)   # (L, H, D, DK)
    wk = params["wk"].reshape(L, D, H, DK).transpose(0, 2, 1, 3)
    wv = params["wv"].reshape(L, D, H, DK).transpose(0, 2, 1, 3)
    wo = params["wo"].reshape(L, H, DK, D)                         # (L, H, DK, D)
    m = jnp.einsum('lhdk,lhek->lhde', wq, wk).astype(jnp.bfloat16)   # Wq_h Wk_h^T
    vo = jnp.einsum('lhdk,lhke->lhde', wv, wo).astype(jnp.bfloat16)  # Wv_h Wo_h
    lns = jnp.concatenate([params["ln1"], params["ln2"], params["lnf"][None]],
                          axis=0).reshape(2 * L + 1, 1, D)           # f32
    wi = params["wi"].astype(jnp.bfloat16)                           # (L, D, DFF)
    wff = params["wff"].astype(jnp.bfloat16)                         # (L, DFF, D)
    lin_w = params["lin_w"].T                                        # (1, D) f32
    lin_b = params["lin_b"]                                          # (1, 1) f32 -> SMEM
    return m, vo, lns, wi, wff, lin_w, lin_b


def init_params(key):
    ks = jax.random.split(key, 9)
    n = lambda k, shp, s=0.02: (s * jax.random.normal(k, shp)).astype(jnp.float32)
    return dict(
        wq=n(ks[0], (L, D, H * DK)),
        wk=n(ks[1], (L, D, H * DK)),
        wv=n(ks[2], (L, D, H * DK)),
        wo=n(ks[3], (L, H * DK, D)),
        ln1=jnp.ones((L, D), jnp.float32),
        wi=n(ks[4], (L, D, DFF)),
        wff=n(ks[5], (L, DFF, D)),
        ln2=jnp.ones((L, D), jnp.float32),
        lnf=jnp.ones((D,), jnp.float32),
        rel_bias=n(ks[6], (NUM_BUCKETS, H)),
        lin_w=n(ks[7], (D, 1), 0.1),
        lin_b=n(ks[8], (1, 1), 0.1),
    )


def discriminator_forward(z, params, class_token="first_token"):
    m, vo, lns, wi, wff, lin_w, lin_b = _pack_params(params)
    bias = _block_bias(params["rel_bias"])            # (H, N, N)
    z2 = z.reshape(N, D).astype(jnp.float32)          # fold batch into rows

    vmem = lambda: pl.BlockSpec(memory_space=pltpu.MemorySpace.VMEM)
    logits = pl.pallas_call(
        t5_disc_kernel,
        out_shape=jax.ShapeDtypeStruct((1, N), jnp.float32),
        in_specs=[vmem(), vmem(), vmem(), vmem(), vmem(), vmem(), vmem(), vmem(),
                  pl.BlockSpec(memory_space=pltpu.MemorySpace.SMEM)],
        out_specs=vmem(),
    )(z2, bias, m, vo, lns, wi, wff, lin_w, lin_b)

    logits = logits.reshape(B, S)                     # 16 floats of post-kernel glue
    if class_token == "first_token":
        return logits[:, 0:1]
    elif class_token == "mean_pooling":
        return logits.mean(axis=1, keepdims=True)
    elif class_token == "last_token":
        return logits[:, S - 1:S]
    else:
        raise Exception("Choose class_token in [first_token, mean_pooling, last_token]")


# --------------------------------------------------------------------------------------
# Pure-JAX f32 reference (standard per-head T5 math) for the correctness check.
# --------------------------------------------------------------------------------------
def reference_forward(z, params):
    pos_bias = make_position_bias(params["rel_bias"])
    outs = []
    for b in range(B):
        x = z[b]
        for l in range(L):
            y = _rmsnorm(x, params["ln1"][l])
            q, k, v = y @ params["wq"][l], y @ params["wk"][l], y @ params["wv"][l]
            attn = jnp.zeros((S, D), jnp.float32)
            for h in range(H):
                qh, kh, vh = (t[:, h * DK:(h + 1) * DK] for t in (q, k, v))
                s = qh @ kh.T + pos_bias[h]
                p = jax.nn.softmax(s, axis=-1)
                attn = attn + (p @ vh) @ params["wo"][l][h * DK:(h + 1) * DK, :]
            x = x + attn
            y2 = _rmsnorm(x, params["ln2"][l])
            x = x + jnp.maximum(y2 @ params["wi"][l], 0.0) @ params["wff"][l]
        x = _rmsnorm(x, params["lnf"])
        outs.append(x @ params["lin_w"] + params["lin_b"])
    return jnp.stack(outs)[:, 0, :]                   # first_token: (B, 1)


if __name__ == "__main__":
    key = jax.random.PRNGKey(0)
    kp, kz = jax.random.split(key)
    params = init_params(kp)
    z = jax.random.normal(kz, (B, S, D), dtype=jnp.float32)   # inputs_embeds

    out = jax.block_until_ready(discriminator_forward(z, params, class_token="first_token"))
    assert out.shape == (B, 1), out.shape

    ref = jax.block_until_ready(reference_forward(z, params))
    # Kernel uses bf16 MXU operands (f32 accumulate) vs the pure-f32 reference,
    # so the tolerance is loosened from 1e-4 to 1e-2 (observed diff ~1e-4..1e-3).
    assert jnp.allclose(out, ref, rtol=1e-2, atol=1e-2), (out, ref)

    print("KERNEL_OK")
</pallas_src>

<mosaic_0001>
module attributes {stable_mosaic.version = 11 : i64} {
  func.func @t5_disc_kernel(%arg0: memref<16x32xf32, #tpu.memory_space<vmem>>, %arg1: memref<4x16x16xf32, #tpu.memory_space<vmem>>, %arg2: memref<2x4x32x32xbf16, #tpu.memory_space<vmem>>, %arg3: memref<2x4x32x32xbf16, #tpu.memory_space<vmem>>, %arg4: memref<5x1x32xf32, #tpu.memory_space<vmem>>, %arg5: memref<2x32x64xbf16, #tpu.memory_space<vmem>>, %arg6: memref<2x64x32xbf16, #tpu.memory_space<vmem>>, %arg7: memref<1x32xf32, #tpu.memory_space<vmem>>, %arg8: memref<1x1xf32, #tpu.memory_space<smem>>, %arg9: memref<1x16xf32, #tpu.memory_space<vmem>>) attributes {dimension_semantics = [], scalar_prefetch = 0 : i64, scratch_operands = 0 : i64, tpu.core_type = #tpu.core_type<tc>} {
    %c0 = arith.constant 0 : index
    %c0_0 = arith.constant 0 : index
    %0 = vector.load %arg0[%c0, %c0_0] : memref<16x32xf32, #tpu.memory_space<vmem>>, vector<16x32xf32>
    %c0_1 = arith.constant 0 : index
    %c0_2 = arith.constant 0 : index
    %c0_3 = arith.constant 0 : index
    %1 = vector.load %arg1[%c0_1, %c0_2, %c0_3] : memref<4x16x16xf32, #tpu.memory_space<vmem>>, vector<4x16x16xf32>
    %c0_4 = arith.constant 0 : index
    %c0_5 = arith.constant 0 : index
    %c0_6 = arith.constant 0 : index
    %2 = vector.load %arg4[%c0_4, %c0_5, %c0_6] : memref<5x1x32xf32, #tpu.memory_space<vmem>>, vector<1x1x32xf32>
    %3 = vector.shape_cast %2 : vector<1x1x32xf32> to vector<1x32xf32>
    %4 = arith.mulf %0, %0 : vector<16x32xf32>
    %cst = arith.constant dense<0.000000e+00> : vector<16xf32>
    %5 = vector.multi_reduction <add>, %4, %cst [1] : vector<16x32xf32> to vector<16xf32>
    %6 = vector.shape_cast %5 : vector<16xf32> to vector<16x1xf32>
    %cst_7 = arith.constant 3.200000e+01 : f32
    %7 = vector.broadcast %cst_7 : f32 to vector<16x1xf32>
    %8 = arith.divf %6, %7 : vector<16x1xf32>
    %cst_8 = arith.constant 9.99999997E-7 : f32
    %9 = vector.broadcast %cst_8 : f32 to vector<16x1xf32>
    %10 = arith.addf %8, %9 : vector<16x1xf32>
    %11 = math.rsqrt %10 : vector<16x1xf32>
    %12 = vector.broadcast %11 : vector<16x1xf32> to vector<16x32xf32>
    %13 = arith.mulf %0, %12 : vector<16x32xf32>
    %14 = vector.broadcast %3 : vector<1x32xf32> to vector<16x32xf32>
    %15 = arith.mulf %13, %14 : vector<16x32xf32>
    %16 = arith.truncf %15 : vector<16x32xf32> to vector<16x32xbf16>
    %17 = vector.shape_cast %16 : vector<16x32xbf16> to vector<1x16x32xbf16>
    %18 = vector.broadcast %17 : vector<1x16x32xbf16> to vector<4x16x32xbf16>
    %c0_9 = arith.constant 0 : index
    %c0_10 = arith.constant 0 : index
    %c0_11 = arith.constant 0 : index
    %c0_12 = arith.constant 0 : index
    %19 = vector.load %arg2[%c0_9, %c0_10, %c0_11, %c0_12] : memref<2x4x32x32xbf16, #tpu.memory_space<vmem>>, vector<1x4x32x32xbf16>
    %20 = vector.shape_cast %19 : vector<1x4x32x32xbf16> to vector<4x32x32xbf16>
    "tpu.trace_start"() <{level = 10 : i32, message = "hnd,hde->hne"}> : () -> ()
    %cst_13 = arith.constant dense<0.000000e+00> : vector<4x16x32xf32>
    %21 = tpu.matmul %18, %20, %cst_13 {dimension_numbers = #tpu.dot_dimension_numbers<[2], [1], [1], [2], [0, 0, 0, 1, 1, 2], [0], [0]>} : vector<4x16x32xbf16>, vector<4x32x32xbf16>, vector<4x16x32xf32> -> vector<4x16x32xf32>
    "tpu.trace_stop"() : () -> ()
    %22 = arith.truncf %21 : vector<4x16x32xf32> to vector<4x16x32xbf16>
    "tpu.trace_start"() <{level = 10 : i32, message = "hne,hme->hnm"}> : () -> ()
    %cst_14 = arith.constant dense<0.000000e+00> : vector<4x16x16xf32>
    %23 = tpu.matmul %22, %18, %cst_14 {dimension_numbers = #tpu.dot_dimension_numbers<[2], [2], [1], [1], [0, 0, 0, 1, 1, 1], [0], [0]>} : vector<4x16x32xbf16>, vector<4x16x32xbf16>, vector<4x16x16xf32> -> vector<4x16x16xf32>
    "tpu.trace_stop"() : () -> ()
    %24 = arith.addf %23, %1 : vector<4x16x16xf32>
    %cst_15 = arith.constant dense<0xFF800000> : vector<4x16xf32>
    %25 = vector.multi_reduction <maximumf>, %24, %cst_15 [2] : vector<4x16x16xf32> to vector<4x16xf32>
    %26 = vector.shape_cast %25 : vector<4x16xf32> to vector<4x16x1xf32>
    %27 = vector.broadcast %26 : vector<4x16x1xf32> to vector<4x16x16xf32>
    %28 = arith.subf %24, %27 : vector<4x16x16xf32>
    %29 = math.exp %28 : vector<4x16x16xf32>
    %cst_16 = arith.constant dense<0.000000e+00> : vector<4x16xf32>
    %30 = vector.multi_reduction <add>, %29, %cst_16 [2] : vector<4x16x16xf32> to vector<4x16xf32>
    %31 = vector.shape_cast %30 : vector<4x16xf32> to vector<4x16x1xf32>
    %32 = tpu.reciprocal %31 {approx = true} : vector<4x16x1xf32> -> vector<4x16x1xf32>
    %33 = vector.broadcast %32 : vector<4x16x1xf32> to vector<4x16x16xf32>
    %34 = arith.mulf %29, %33 : vector<4x16x16xf32>
    %35 = arith.truncf %34 : vector<4x16x16xf32> to vector<4x16x16xbf16>
    "tpu.trace_start"() <{level = 10 : i32, message = "hnm,hmd->hnd"}> : () -> ()
    %cst_17 = arith.constant dense<0.000000e+00> : vector<4x16x32xf32>
    %36 = tpu.matmul %35, %18, %cst_17 {dimension_numbers = #tpu.dot_dimension_numbers<[2], [1], [1], [2], [0, 0, 0, 1, 1, 2], [0], [0]>} : vector<4x16x16xbf16>, vector<4x16x32xbf16>, vector<4x16x32xf32> -> vector<4x16x32xf32>
    "tpu.trace_stop"() : () -> ()
    %37 = arith.truncf %36 : vector<4x16x32xf32> to vector<4x16x32xbf16>
    %c0_18 = arith.constant 0 : index
    %c0_19 = arith.constant 0 : index
    %c0_20 = arith.constant 0 : index
    %c0_21 = arith.constant 0 : index
    %38 = vector.load %arg3[%c0_18, %c0_19, %c0_20, %c0_21] : memref<2x4x32x32xbf16, #tpu.memory_space<vmem>>, vector<1x4x32x32xbf16>
    %39 = vector.shape_cast %38 : vector<1x4x32x32xbf16> to vector<4x32x32xbf16>
    "tpu.trace_start"() <{level = 10 : i32, message = "hnd,hde->hne"}> : () -> ()
    %cst_22 = arith.constant dense<0.000000e+00> : vector<4x16x32xf32>
    %40 = tpu.matmul %37, %39, %cst_22 {dimension_numbers = #tpu.dot_dimension_numbers<[2], [1], [1], [2], [0, 0, 0, 1, 1, 2], [0], [0]>} : vector<4x16x32xbf16>, vector<4x32x32xbf16>, vector<4x16x32xf32> -> vector<4x16x32xf32>
    "tpu.trace_stop"() : () -> ()
    %cst_23 = arith.constant dense<0.000000e+00> : vector<16x32xf32>
    %41 = vector.multi_reduction <add>, %40, %cst_23 [0] : vector<4x16x32xf32> to vector<16x32xf32>
    %42 = arith.addf %0, %41 : vector<16x32xf32>
    %c2 = arith.constant 2 : index
    %c0_24 = arith.constant 0 : index
    %c0_25 = arith.constant 0 : index
    %43 = vector.load %arg4[%c2, %c0_24, %c0_25] : memref<5x1x32xf32, #tpu.memory_space<vmem>>, vector<1x1x32xf32>
    %44 = vector.shape_cast %43 : vector<1x1x32xf32> to vector<1x32xf32>
    %45 = arith.mulf %42, %42 : vector<16x32xf32>
    %cst_26 = arith.constant dense<0.000000e+00> : vector<16xf32>
    %46 = vector.multi_reduction <add>, %45, %cst_26 [1] : vector<16x32xf32> to vector<16xf32>
    %47 = vector.shape_cast %46 : vector<16xf32> to vector<16x1xf32>
    %cst_27 = arith.constant 3.200000e+01 : f32
    %48 = vector.broadcast %cst_27 : f32 to vector<16x1xf32>
    %49 = arith.divf %47, %48 : vector<16x1xf32>
    %cst_28 = arith.constant 9.99999997E-7 : f32
    %50 = vector.broadcast %cst_28 : f32 to vector<16x1xf32>
    %51 = arith.addf %49, %50 : vector<16x1xf32>
    %52 = math.rsqrt %51 : vector<16x1xf32>
    %53 = vector.broadcast %52 : vector<16x1xf32> to vector<16x32xf32>
    %54 = arith.mulf %42, %53 : vector<16x32xf32>
    %55 = vector.broadcast %44 : vector<1x32xf32> to vector<16x32xf32>
    %56 = arith.mulf %54, %55 : vector<16x32xf32>
    %57 = arith.truncf %56 : vector<16x32xf32> to vector<16x32xbf16>
    %c0_29 = arith.constant 0 : index
    %c0_30 = arith.constant 0 : index
    %c0_31 = arith.constant 0 : index
    %58 = vector.load %arg5[%c0_29, %c0_30, %c0_31] : memref<2x32x64xbf16, #tpu.memory_space<vmem>>, vector<1x32x64xbf16>
    %59 = vector.shape_cast %58 : vector<1x32x64xbf16> to vector<32x64xbf16>
    %cst_32 = arith.constant dense<0.000000e+00> : vector<16x64xf32>
    %60 = tpu.matmul %57, %59, %cst_32 {dimension_numbers = #tpu.dot_dimension_numbers<[1], [0], [0], [1], [0, 0, 1, 1], [], []>} : vector<16x32xbf16>, vector<32x64xbf16>, vector<16x64xf32> -> vector<16x64xf32>
    %cst_33 = arith.constant 0.000000e+00 : f32
    %61 = vector.broadcast %cst_33 : f32 to vector<16x64xf32>
    %62 = arith.maximumf %60, %61 : vector<16x64xf32>
    %63 = arith.truncf %62 : vector<16x64xf32> to vector<16x64xbf16>
    %c0_34 = arith.constant 0 : index
    %c0_35 = arith.constant 0 : index
    %c0_36 = arith.constant 0 : index
    %64 = vector.load %arg6[%c0_34, %c0_35, %c0_36] : memref<2x64x32xbf16, #tpu.memory_space<vmem>>, vector<1x64x32xbf16>
    %65 = vector.shape_cast %64 : vector<1x64x32xbf16> to vector<64x32xbf16>
    %cst_37 = arith.constant dense<0.000000e+00> : vector<16x32xf32>
    %66 = tpu.matmul %63, %65, %cst_37 {dimension_numbers = #tpu.dot_dimension_numbers<[1], [0], [0], [1], [0, 0, 1, 1], [], []>} : vector<16x64xbf16>, vector<64x32xbf16>, vector<16x32xf32> -> vector<16x32xf32>
    %67 = arith.addf %42, %66 : vector<16x32xf32>
    %c1 = arith.constant 1 : index
    %c0_38 = arith.constant 0 : index
    %c0_39 = arith.constant 0 : index
    %68 = vector.load %arg4[%c1, %c0_38, %c0_39] : memref<5x1x32xf32, #tpu.memory_space<vmem>>, vector<1x1x32xf32>
    %69 = vector.shape_cast %68 : vector<1x1x32xf32> to vector<1x32xf32>
    %70 = arith.mulf %67, %67 : vector<16x32xf32>
    %cst_40 = arith.constant dense<0.000000e+00> : vector<16xf32>
    %71 = vector.multi_reduction <add>, %70, %cst_40 [1] : vector<16x32xf32> to vector<16xf32>
    %72 = vector.shape_cast %71 : vector<16xf32> to vector<16x1xf32>
    %cst_41 = arith.constant 3.200000e+01 : f32
    %73 = vector.broadcast %cst_41 : f32 to vector<16x1xf32>
    %74 = arith.divf %72, %73 : vector<16x1xf32>
    %cst_42 = arith.constant 9.99999997E-7 : f32
    %75 = vector.broadcast %cst_42 : f32 to vector<16x1xf32>
    %76 = arith.addf %74, %75 : vector<16x1xf32>
    %77 = math.rsqrt %76 : vector<16x1xf32>
    %78 = vector.broadcast %77 : vector<16x1xf32> to vector<16x32xf32>
    %79 = arith.mulf %67, %78 : vector<16x32xf32>
    %80 = vector.broadcast %69 : vector<1x32xf32> to vector<16x32xf32>
    %81 = arith.mulf %79, %80 : vector<16x32xf32>
    %82 = arith.truncf %81 : vector<16x32xf32> to vector<16x32xbf16>
    %83 = vector.shape_cast %82 : vector<16x32xbf16> to vector<1x16x32xbf16>
    %84 = vector.broadcast %83 : vector<1x16x32xbf16> to vector<4x16x32xbf16>
    %c1_43 = arith.constant 1 : index
    %c0_44 = arith.constant 0 : index
    %c0_45 = arith.constant 0 : index
    %c0_46 = arith.constant 0 : index
    %85 = vector.load %arg2[%c1_43, %c0_44, %c0_45, %c0_46] : memref<2x4x32x32xbf16, #tpu.memory_space<vmem>>, vector<1x4x32x32xbf16>
    %86 = vector.shape_cast %85 : vector<1x4x32x32xbf16> to vector<4x32x32xbf16>
    "tpu.trace_start"() <{level = 10 : i32, message = "hnd,hde->hne"}> : () -> ()
    %cst_47 = arith.constant dense<0.000000e+00> : vector<4x16x32xf32>
    %87 = tpu.matmul %84, %86, %cst_47 {dimension_numbers = #tpu.dot_dimension_numbers<[2], [1], [1], [2], [0, 0, 0, 1, 1, 2], [0], [0]>} : vector<4x16x32xbf16>, vector<4x32x32xbf16>, vector<4x16x32xf32> -> vector<4x16x32xf32>
    "tpu.trace_stop"() : () -> ()
    %88 = arith.truncf %87 : vector<4x16x32xf32> to vector<4x16x32xbf16>
    "tpu.trace_start"() <{level = 10 : i32, message = "hne,hme->hnm"}> : () -> ()
    %cst_48 = arith.constant dense<0.000000e+00> : vector<4x16x16xf32>
    %89 = tpu.matmul %88, %84, %cst_48 {dimension_numbers = #tpu.dot_dimension_numbers<[2], [2], [1], [1], [0, 0, 0, 1, 1, 1], [0], [0]>} : vector<4x16x32xbf16>, vector<4x16x32xbf16>, vector<4x16x16xf32> -> vector<4x16x16xf32>
    "tpu.trace_stop"() : () -> ()
    %90 = arith.addf %89, %1 : vector<4x16x16xf32>
    %cst_49 = arith.constant dense<0xFF800000> : vector<4x16xf32>
    %91 = vector.multi_reduction <maximumf>, %90, %cst_49 [2] : vector<4x16x16xf32> to vector<4x16xf32>
    %92 = vector.shape_cast %91 : vector<4x16xf32> to vector<4x16x1xf32>
    %93 = vector.broadcast %92 : vector<4x16x1xf32> to vector<4x16x16xf32>
    %94 = arith.subf %90, %93 : vector<4x16x16xf32>
    %95 = math.exp %94 : vector<4x16x16xf32>
    %cst_50 = arith.constant dense<0.000000e+00> : vector<4x16xf32>
    %96 = vector.multi_reduction <add>, %95, %cst_50 [2] : vector<4x16x16xf32> to vector<4x16xf32>
    %97 = vector.shape_cast %96 : vector<4x16xf32> to vector<4x16x1xf32>
    %98 = tpu.reciprocal %97 {approx = true} : vector<4x16x1xf32> -> vector<4x16x1xf32>
    %99 = vector.broadcast %98 : vector<4x16x1xf32> to vector<4x16x16xf32>
    %100 = arith.mulf %95, %99 : vector<4x16x16xf32>
    %101 = arith.truncf %100 : vector<4x16x16xf32> to vector<4x16x16xbf16>
    "tpu.trace_start"() <{level = 10 : i32, message = "hnm,hmd->hnd"}> : () -> ()
    %cst_51 = arith.constant dense<0.000000e+00> : vector<4x16x32xf32>
    %102 = tpu.matmul %101, %84, %cst_51 {dimension_numbers = #tpu.dot_dimension_numbers<[2], [1], [1], [2], [0, 0, 0, 1, 1, 2], [0], [0]>} : vector<4x16x16xbf16>, vector<4x16x32xbf16>, vector<4x16x32xf32> -> vector<4x16x32xf32>
    "tpu.trace_stop"() : () -> ()
    %103 = arith.truncf %102 : vector<4x16x32xf32> to vector<4x16x32xbf16>
    %c1_52 = arith.constant 1 : index
    %c0_53 = arith.constant 0 : index
    %c0_54 = arith.constant 0 : index
    %c0_55 = arith.constant 0 : index
    %104 = vector.load %arg3[%c1_52, %c0_53, %c0_54, %c0_55] : memref<2x4x32x32xbf16, #tpu.memory_space<vmem>>, vector<1x4x32x32xbf16>
    %105 = vector.shape_cast %104 : vector<1x4x32x32xbf16> to vector<4x32x32xbf16>
    "tpu.trace_start"() <{level = 10 : i32, message = "hnd,hde->hne"}> : () -> ()
    %cst_56 = arith.constant dense<0.000000e+00> : vector<4x16x32xf32>
    %106 = tpu.matmul %103, %105, %cst_56 {dimension_numbers = #tpu.dot_dimension_numbers<[2], [1], [1], [2], [0, 0, 0, 1, 1, 2], [0], [0]>} : vector<4x16x32xbf16>, vector<4x32x32xbf16>, vector<4x16x32xf32> -> vector<4x16x32xf32>
    "tpu.trace_stop"() : () -> ()
    %cst_57 = arith.constant dense<0.000000e+00> : vector<16x32xf32>
    %107 = vector.multi_reduction <add>, %106, %cst_57 [0] : vector<4x16x32xf32> to vector<16x32xf32>
    %108 = arith.addf %67, %107 : vector<16x32xf32>
    %c3 = arith.constant 3 : index
    %c0_58 = arith.constant 0 : index
    %c0_59 = arith.constant 0 : index
    %109 = vector.load %arg4[%c3, %c0_58, %c0_59] : memref<5x1x32xf32, #tpu.memory_space<vmem>>, vector<1x1x32xf32>
    %110 = vector.shape_cast %109 : vector<1x1x32xf32> to vector<1x32xf32>
    %111 = arith.mulf %108, %108 : vector<16x32xf32>
    %cst_60 = arith.constant dense<0.000000e+00> : vector<16xf32>
    %112 = vector.multi_reduction <add>, %111, %cst_60 [1] : vector<16x32xf32> to vector<16xf32>
    %113 = vector.shape_cast %112 : vector<16xf32> to vector<16x1xf32>
    %cst_61 = arith.constant 3.200000e+01 : f32
    %114 = vector.broadcast %cst_61 : f32 to vector<16x1xf32>
    %115 = arith.divf %113, %114 : vector<16x1xf32>
    %cst_62 = arith.constant 9.99999997E-7 : f32
    %116 = vector.broadcast %cst_62 : f32 to vector<16x1xf32>
    %117 = arith.addf %115, %116 : vector<16x1xf32>
    %118 = math.rsqrt %117 : vector<16x1xf32>
    %119 = vector.broadcast %118 : vector<16x1xf32> to vector<16x32xf32>
    %120 = arith.mulf %108, %119 : vector<16x32xf32>
    %121 = vector.broadcast %110 : vector<1x32xf32> to vector<16x32xf32>
    %122 = arith.mulf %120, %121 : vector<16x32xf32>
    %123 = arith.truncf %122 : vector<16x32xf32> to vector<16x32xbf16>
    %c1_63 = arith.constant 1 : index
    %c0_64 = arith.constant 0 : index
    %c0_65 = arith.constant 0 : index
    %124 = vector.load %arg5[%c1_63, %c0_64, %c0_65] : memref<2x32x64xbf16, #tpu.memory_space<vmem>>, vector<1x32x64xbf16>
    %125 = vector.shape_cast %124 : vector<1x32x64xbf16> to vector<32x64xbf16>
    %cst_66 = arith.constant dense<0.000000e+00> : vector<16x64xf32>
    %126 = tpu.matmul %123, %125, %cst_66 {dimension_numbers = #tpu.dot_dimension_numbers<[1], [0], [0], [1], [0, 0, 1, 1], [], []>} : vector<16x32xbf16>, vector<32x64xbf16>, vector<16x64xf32> -> vector<16x64xf32>
    %cst_67 = arith.constant 0.000000e+00 : f32
    %127 = vector.broadcast %cst_67 : f32 to vector<16x64xf32>
    %128 = arith.maximumf %126, %127 : vector<16x64xf32>
    %129 = arith.truncf %128 : vector<16x64xf32> to vector<16x64xbf16>
    %c1_68 = arith.constant 1 : index
    %c0_69 = arith.constant 0 : index
    %c0_70 = arith.constant 0 : index
    %130 = vector.load %arg6[%c1_68, %c0_69, %c0_70] : memref<2x64x32xbf16, #tpu.memory_space<vmem>>, vector<1x64x32xbf16>
    %131 = vector.shape_cast %130 : vector<1x64x32xbf16> to vector<64x32xbf16>
    %cst_71 = arith.constant dense<0.000000e+00> : vector<16x32xf32>
    %132 = tpu.matmul %129, %131, %cst_71 {dimension_numbers = #tpu.dot_dimension_numbers<[1], [0], [0], [1], [0, 0, 1, 1], [], []>} : vector<16x64xbf16>, vector<64x32xbf16>, vector<16x32xf32> -> vector<16x32xf32>
    %133 = arith.addf %108, %132 : vector<16x32xf32>
    %c4 = arith.constant 4 : index
    %c0_72 = arith.constant 0 : index
    %c0_73 = arith.constant 0 : index
    %134 = vector.load %arg4[%c4, %c0_72, %c0_73] : memref<5x1x32xf32, #tpu.memory_space<vmem>>, vector<1x1x32xf32>
    %135 = vector.shape_cast %134 : vector<1x1x32xf32> to vector<1x32xf32>
    %136 = arith.mulf %133, %133 : vector<16x32xf32>
    %cst_74 = arith.constant dense<0.000000e+00> : vector<16xf32>
    %137 = vector.multi_reduction <add>, %136, %cst_74 [1] : vector<16x32xf32> to vector<16xf32>
    %138 = vector.shape_cast %137 : vector<16xf32> to vector<16x1xf32>
    %cst_75 = arith.constant 3.200000e+01 : f32
    %139 = vector.broadcast %cst_75 : f32 to vector<16x1xf32>
    %140 = arith.divf %138, %139 : vector<16x1xf32>
    %cst_76 = arith.constant 9.99999997E-7 : f32
    %141 = vector.broadcast %cst_76 : f32 to vector<16x1xf32>
    %142 = arith.addf %140, %141 : vector<16x1xf32>
    %143 = math.rsqrt %142 : vector<16x1xf32>
    %144 = vector.broadcast %143 : vector<16x1xf32> to vector<16x32xf32>
    %145 = arith.mulf %133, %144 : vector<16x32xf32>
    %146 = vector.broadcast %135 : vector<1x32xf32> to vector<16x32xf32>
    %147 = arith.mulf %145, %146 : vector<16x32xf32>
    %c0_77 = arith.constant 0 : index
    %c0_78 = arith.constant 0 : index
    %148 = vector.load %arg7[%c0_77, %c0_78] : memref<1x32xf32, #tpu.memory_space<vmem>>, vector<1x32xf32>
    "tpu.trace_start"() <{level = 10 : i32, message = "od,nd->on"}> : () -> ()
    %cst_79 = arith.constant dense<0.000000e+00> : vector<1x16xf32>
    %149 = tpu.matmul %148, %147, %cst_79 {dimension_numbers = #tpu.dot_dimension_numbers<[1], [1], [0], [0], [0, 0, 1, 0], [], []>} : vector<1x32xf32>, vector<16x32xf32>, vector<1x16xf32> -> vector<1x16xf32>
    "tpu.trace_stop"() : () -> ()
    %c0_80 = arith.constant 0 : index
    %c0_81 = arith.constant 0 : index
    %150 = memref.load %arg8[%c0_80, %c0_81] : memref<1x1xf32, #tpu.memory_space<smem>>
    %151 = vector.broadcast %150 : f32 to vector<1x16xf32>
    %152 = arith.addf %149, %151 : vector<1x16xf32>
    %c0_82 = arith.constant 0 : index
    %c0_83 = arith.constant 0 : index
    %153 = vector.load %arg9[%c0_82, %c0_83] : memref<1x16xf32, #tpu.memory_space<vmem>>, vector<1x16xf32>
    tpu.vector_store %arg9[%c0_82, %c0_83], %152 {strides = array<i32>} : memref<1x16xf32, #tpu.memory_space<vmem>>, vector<1x16xf32>,
    return
  }
}

</mosaic_0001>

<llo_original>
// kernel: tpu_custom_call.1
$region0: #{tpu_custom_call.1}
  #allocation0 [shape = 'u32[]', space=smem, size = 0x4, offset = 0x4, fixed_abs, tag = 'smem constant byte address 0x4 - core index']
  #allocation1 [shape = 'u32[144,128]{1,0:T(1,128)}', space=vmem, size = 0x12000, scoped, tag = 'internal scratch']
  #allocation2 [shape = 'f32[1,1]{1,0:T(1,128)S(6)}', space=smem, size = 0x200, scoped, tag = 'scoped memory for tpu_custom_call.1']
  %s0 = inlined_call_operand.hbm [shape: f32[16,32], index: 0, kind: input, shape index: {}]
  %s1 = inlined_call_operand.vmem [shape: f32[4,16,16], index: 1, kind: input, shape index: {}]
  %s2 = inlined_call_operand.hbm [shape: bf16[2,4,32,32], index: 2, kind: input, shape index: {}]
  %s3 = inlined_call_operand.hbm [shape: bf16[2,4,32,32], index: 3, kind: input, shape index: {}]
  %s4 = inlined_call_operand.vmem [shape: f32[5,1,32], index: 4, kind: input, shape index: {}]
  %s5 = inlined_call_operand.vmem [shape: bf16[2,32,64], index: 5, kind: input, shape index: {}]
  %s6 = inlined_call_operand.vmem [shape: bf16[2,64,32], index: 6, kind: input, shape index: {}]
  %s7 = inlined_call_operand.vmem [shape: f32[1,32], index: 7, kind: input, shape index: {}]
  %s8 = inlined_call_operand.<no memory space> [shape: f32[1,1], index: 8, kind: input, shape index: {}]
  %s9 = inlined_call_operand.hbm [shape: f32[1,16], index: 9, kind: output, shape index: {}]
  %s10 = sld [smem:[#allocation0]]
  $region58: #{tpu_custom_call.1} parent=0
    _
  %s12 = ssub.s32 1, %s10
  %s13 = scalar_select 0, %s12, %s10
  %14 = sst [smem:[#allocation2]] %s8
  $region1: #{tpu_custom_call.1} parent=0
    #allocation3 [shape = 'u8[8192]{0}', space=vmem, size = 0x2000, scoped, tag = 'input window, operand 0, single buffered']
    #allocation4 [shape = 's32[1]{0}', space=sflag, size = 0x4, scoped, tag = 'scoped memory for tpu_custom_call.1']
    #allocation5 [shape = 's32[1]{0}', space=sflag, size = 0x4, scoped, tag = 'scoped memory for tpu_custom_call.1']
    #allocation6 [shape = 'u8[65536]{0}', space=vmem, size = 0x10000, scoped, tag = 'input window, operand 2, single buffered']
    #allocation7 [shape = 's32[1]{0}', space=sflag, size = 0x4, scoped, tag = 'scoped memory for tpu_custom_call.1']
    #allocation8 [shape = 'u8[65536]{0}', space=vmem, size = 0x10000, scoped, tag = 'input window, operand 3, single buffered']
    #allocation9 [shape = 'u8[512]{0}', space=vmem, size = 0x400, scoped, tag = 'output window, operand 0, single buffered']
    %15 = vsyncpa [#allocation4], 0
    %16 = vsyncpa [#allocation7], 0
    %17 = vsyncpa [#allocation5], 0
    // Predicated region
    $region2: #{tpu_custom_call.1} parent=1 // pred_check
      _
    $region3: #{tpu_custom_call.1} parent=1 // pred_check_branch
      %19 = sbr.rel (0) target = $region5
    $region4: #{tpu_custom_call.1} parent=1 // pred_region
      %s21 = ssub.s32 256, 256
      %22 = vsyncadd [#allocation4], %s21
      %s23 = sshll.u32 [#allocation3], 4
      %s24 = int_to_ptr.vmem [resolvable:$true] %s23
      %29 = dma.hbm_to_vmem [thread:$0]  %s0, 256, %s24, [#allocation4], 128, 128, 8
    $region5: #{tpu_custom_call.1} parent=1 // pred_fallthru
      _
    // Predicated region
    $region6: #{tpu_custom_call.1} parent=1 // pred_check
      _
    $region7: #{tpu_custom_call.1} parent=1 // pred_check_branch
      %31 = sbr.rel (0) target = $region9
    $region8: #{tpu_custom_call.1} parent=1 // pred_region
      _
    $region9: #{tpu_custom_call.1} parent=1 // pred_fallthru
      _
    // Predicated region
    $region10: #{tpu_custom_call.1} parent=1 // pred_check
      _
    $region11: #{tpu_custom_call.1} parent=1 // pred_check_branch
      %33 = sbr.rel (0) target = $region13
    $region12: #{tpu_custom_call.1} parent=1 // pred_region
      %s35 = ssub.s32 2048, 2048
      %36 = vsyncadd [#allocation7], %s35
      %s37 = sshll.u32 [#allocation6], 4
      %s38 = int_to_ptr.vmem [resolvable:$true] %s37
      %43 = dma.hbm_to_vmem [thread:$0]  %s2, 2048, %s38, [#allocation7], 64, 64, 4
    $region13: #{tpu_custom_call.1} parent=1 // pred_fallthru
      _
    // Predicated region
    $region14: #{tpu_custom_call.1} parent=1 // pred_check
      _
    $region15: #{tpu_custom_call.1} parent=1 // pred_check_branch
      %45 = sbr.rel (0) target = $region17
    $region16: #{tpu_custom_call.1} parent=1 // pred_region
      %s47 = ssub.s32 2048, 2048
      %48 = vsyncadd [#allocation7], %s47
      %s49 = sshll.u32 [#allocation8], 4
      %s50 = int_to_ptr.vmem [resolvable:$true] %s49
      %55 = dma.hbm_to_vmem [thread:$0]  %s3, 2048, %s50, [#allocation7], 64, 64, 4
    $region17: #{tpu_custom_call.1} parent=1 // pred_fallthru
      _
    // Predicated region
    $region18: #{tpu_custom_call.1} parent=1 // pred_check
      _
    $region19: #{tpu_custom_call.1} parent=1 // pred_check_branch
      %57 = sbr.rel (0) target = $region21
    $region20: #{tpu_custom_call.1} parent=1 // pred_region
      _
    $region21: #{tpu_custom_call.1} parent=1 // pred_fallthru
      _
    // Predicated region
    $region22: #{tpu_custom_call.1} parent=1 // pred_check
      _
    $region23: #{tpu_custom_call.1} parent=1 // pred_check_branch
      %59 = sbr.rel (0) target = $region25
    $region24: #{tpu_custom_call.1} parent=1 // pred_region
      _
    $region25: #{tpu_custom_call.1} parent=1 // pred_fallthru
      _
    // Predicated region
    $region26: #{tpu_custom_call.1} parent=1 // pred_check
      _
    $region27: #{tpu_custom_call.1} parent=1 // pred_check_branch
      %61 = sbr.rel (0) target = $region29
    $region28: #{tpu_custom_call.1} parent=1 // pred_region
      _
    $region29: #{tpu_custom_call.1} parent=1 // pred_fallthru
      _
    // Predicated region
    $region30: #{tpu_custom_call.1} parent=1 // pred_check
      _
    $region31: #{tpu_custom_call.1} parent=1 // pred_check_branch
      %63 = sbr.rel (0) target = $region33
    $region32: #{tpu_custom_call.1} parent=1 // pred_region
      _
    $region33: #{tpu_custom_call.1} parent=1 // pred_fallthru
      _
    // Predicated region
    $region34: #{tpu_custom_call.1} parent=1 // pred_check
      _
    $region35: #{tpu_custom_call.1} parent=1 // pred_check_branch
      %65 = sbr.rel (0) target = $region37
    $region36: #{tpu_custom_call.1} parent=1 // pred_region
      _
    $region37: #{tpu_custom_call.1} parent=1 // pred_fallthru
      _
    // Predicated region
    $region38: #{tpu_custom_call.1} parent=1 // pred_check
      _
    $region39: #{tpu_custom_call.1} parent=1 // pred_check_branch
      %67 = sbr.rel (0) target = $region41
    $region40: #{tpu_custom_call.1} parent=1 // pred_region
      %68 = dma.done [#allocation4], 256
    $region41: #{tpu_custom_call.1} parent=1 // pred_fallthru
      _
    // Predicated region
    $region42: #{tpu_custom_call.1} parent=1 // pred_check
      _
    $region43: #{tpu_custom_call.1} parent=1 // pred_check_branch
      %70 = sbr.rel (0) target = $region45
    $region44: #{tpu_custom_call.1} parent=1 // pred_region
      %71 = dma.done [#allocation7], 2048
    $region45: #{tpu_custom_call.1} parent=1 // pred_fallthru
      _
    // Predicated region
    $region46: #{tpu_custom_call.1} parent=1 // pred_check
      _
    $region47: #{tpu_custom_call.1} parent=1 // pred_check_branch
      %73 = sbr.rel (0) target = $region49
    $region48: #{tpu_custom_call.1} parent=1 // pred_region
      %74 = dma.done [#allocation7], 2048
    $region49: #{tpu_custom_call.1} parent=1 // pred_fallthru
      _
    %v76 = vld [vmem:[#allocation3] sm:$0xff]
    %v77 = vld [vmem:[#allocation3 + $0x8] sm:$0xff]
    %v78 = vld [vmem:[%s1] sm:$0xff]
    %v79 = vld [vmem:[%s1 + $0x8] sm:$0xff]
    %v80 = vld [vmem:[%s1 + $0x10] sm:$0xff]
    %v81 = vld [vmem:[%s1 + $0x18] sm:$0xff]
    %v82 = vld [vmem:[%s1 + $0x20] sm:$0xff]
    %v83 = vld [vmem:[%s1 + $0x28] sm:$0xff]
    %v84 = vld [vmem:[%s1 + $0x30] sm:$0xff]
    %v85 = vld [vmem:[%s1 + $0x38] sm:$0xff]
    %v86 = vld [vmem:[%s4] sm:$0x1]
    %v87 = vmul.f32 %v76, %v76
    %v88 = vmul.f32 %v77, %v77
    %vm89 = vcmask 261120
    %v90 = vsel %vm89, %v87, 0.0
    %91 = vadd.xlane.f32.xlu0 %v90
    %v92 = vpop.xlane.xlu0 %91
    %v93 = vsel %vm89, %v88, 0.0
    %94 = vadd.xlane.f32.xlu0 %v93
    %v95 = vpop.xlane.xlu0 %94
    %v96 = vrcp.pop 32.0
    %v97 = vmul.f32 %v92, %v96
    %v98 = vmul.f32 %v95, %v96
    %v99 = vadd.f32 %v97, 1e-06
    %v100 = vadd.f32 %v98, 1e-06
    %v101 = vrsqrt.pop %v99
    %v102 = vrsqrt.pop %v100
    %v103 = vmul.f32 %v76, %v101
    %v104 = vmul.f32 %v77, %v102
    %v106 = vlaneseq
    %v107 = vshrl.u32 %v106, 7
    %v108 = vsub.s32 0, %v107
    %v109 = vrot.slane %v86, %v108
    %v111 = vmul.f32 %v103, %v109
    %v112 = vmul.f32 %v104, %v109
    %v113 = vpack.c.bf16 %v112, %v111
    %v114 = vld [vmem:[#allocation6] sm:$0xf]
    %v115 = vld [vmem:[#allocation6 + $0x4] sm:$0xf]
    %v116 = vld [vmem:[#allocation6 + $0x8] sm:$0xf]
    %v117 = vld [vmem:[#allocation6 + $0xc] sm:$0xf]
    %v118 = vld [vmem:[#allocation6 + $0x10] sm:$0xf]
    %v119 = vld [vmem:[#allocation6 + $0x14] sm:$0xf]
    %v120 = vld [vmem:[#allocation6 + $0x18] sm:$0xf]
    %v121 = vld [vmem:[#allocation6 + $0x1c] sm:$0xf]
    %v122 = vld [vmem:[#allocation6 + $0x20] sm:$0xf]
    %v123 = vld [vmem:[#allocation6 + $0x24] sm:$0xf]
    %v124 = vld [vmem:[#allocation6 + $0x28] sm:$0xf]
    %v125 = vld [vmem:[#allocation6 + $0x2c] sm:$0xf]
    %v126 = vld [vmem:[#allocation6 + $0x30] sm:$0xf]
    %v127 = vld [vmem:[#allocation6 + $0x34] sm:$0xf]
    %v128 = vld [vmem:[#allocation6 + $0x38] sm:$0xf]
    %v129 = vld [vmem:[#allocation6 + $0x3c] sm:$0xf]
    %v134 = vunpack.c.l.b16 %v114
    %v135 = vunpack.c.l.b16 %v115
    %v136 = vunpack.c.l.b16 %v116
    %v137 = vunpack.c.l.b16 %v117
    %v138 = vpack.c.b16 %v135, %v134
    %v139 = vpack.c.b16 %v137, %v136
    %v143 = vsel %vm89, %v113, 0
    %145 = vmatprep.subr.bf16.mxu0 0
    %146 = vmatpush1.bf16.msra.mxu0 %v138
    %147 = vmatprep.subr.bf16.mxu0 0
    %148 = vmatpush1.bf16.msra.mxu0 %v139
    %149 = vmatprep.subr.bf16.mxu0 0
    %150 = vmatpush1.bf16.msra.mxu0 0
    %151 = vmatprep.subr.bf16.mxu0 0
    %152 = vmatpush1.bf16.msra.mxu0 0
    %153 = vmatprep.subr.bf16.mxu0 0
    %154 = vmatpush1.bf16.msra.mxu0 0
    %155 = vmatprep.subr.bf16.mxu0 0
    %156 = vmatpush1.bf16.msra.mxu0 0
    %157 = vmatprep.subr.bf16.mxu0 0
    %158 = vmatpush1.bf16.msra.mxu0 0
    %159 = vmatprep.subr.bf16.mxu0 0
    %160 = vmatpush1.bf16.msra.mxu0 0
    %161 = vmatprep.subr.bf16.mxu0 0
    %162 = vmatpush1.bf16.msra.mxu0 0
    %163 = vmatprep.subr.bf16.mxu0 0
    %164 = vmatpush1.bf16.msra.mxu0 0
    %165 = vmatprep.subr.bf16.mxu0 0
    %166 = vmatpush1.bf16.msra.mxu0 0
    %167 = vmatprep.subr.bf16.mxu0 0
    %168 = vmatpush1.bf16.msra.mxu0 0
    %169 = vmatprep.subr.bf16.mxu0 0
    %170 = vmatpush1.bf16.msra.mxu0 0
    %171 = vmatprep.subr.bf16.mxu0 0
    %172 = vmatpush1.bf16.msra.mxu0 0
    %173 = vmatprep.subr.bf16.mxu0 0
    %174 = vmatpush1.bf16.msra.mxu0 0
    %175 = vmatprep.subr.bf16.mxu0 0
    %176 = vmatpush1.bf16.msra.mxu0 0
    %177 = vmatprep.mubr.bf16.mxu0 0
    %178 = vmatmul.mubr.bf16.gmra.mrb[0].mxu0 %v143
    %v179 = vpop.f32.mrb[0].mxu0
    %v180 = vadd.f32 0.0, %v179
    %v181 = vpop.f32.mrb[0].mxu0
    %v182 = vpop.f32.mrb[0].mxu0
    %v183 = vadd.f32 0.0, %v182
    %v184 = vpop.f32.mrb[0].mxu0
    %185 = vdwg.mxu0
    %v190 = vunpack.c.l.b16 %v118
    %v191 = vunpack.c.l.b16 %v119
    %v192 = vunpack.c.l.b16 %v120
    %v193 = vunpack.c.l.b16 %v121
    %v194 = vpack.c.b16 %v191, %v190
    %v195 = vpack.c.b16 %v193, %v192
    %198 = vmatprep.subr.bf16.mxu0 0
    %199 = vmatpush1.bf16.msra.mxu0 %v194
    %200 = vmatprep.subr.bf16.mxu0 0
    %201 = vmatpush1.bf16.msra.mxu0 %v195
    %202 = vmatprep.subr.bf16.mxu0 0
    %203 = vmatpush1.bf16.msra.mxu0 0
    %204 = vmatprep.subr.bf16.mxu0 0
    %205 = vmatpush1.bf16.msra.mxu0 0
    %206 = vmatprep.subr.bf16.mxu0 0
    %207 = vmatpush1.bf16.msra.mxu0 0
    %208 = vmatprep.subr.bf16.mxu0 0
    %209 = vmatpush1.bf16.msra.mxu0 0
    %210 = vmatprep.subr.bf16.mxu0 0
    %211 = vmatpush1.bf16.msra.mxu0 0
    %212 = vmatprep.subr.bf16.mxu0 0
    %213 = vmatpush1.bf16.msra.mxu0 0
    %214 = vmatprep.subr.bf16.mxu0 0
    %215 = vmatpush1.bf16.msra.mxu0 0
    %216 = vmatprep.subr.bf16.mxu0 0
    %217 = vmatpush1.bf16.msra.mxu0 0
    %218 = vmatprep.subr.bf16.mxu0 0
    %219 = vmatpush1.bf16.msra.mxu0 0
    %220 = vmatprep.subr.bf16.mxu0 0
    %221 = vmatpush1.bf16.msra.mxu0 0
    %222 = vmatprep.subr.bf16.mxu0 0
    %223 = vmatpush1.bf16.msra.mxu0 0
    %224 = vmatprep.subr.bf16.mxu0 0
    %225 = vmatpush1.bf16.msra.mxu0 0
    %226 = vmatprep.subr.bf16.mxu0 0
    %227 = vmatpush1.bf16.msra.mxu0 0
    %228 = vmatprep.subr.bf16.mxu0 0
    %229 = vmatpush1.bf16.msra.mxu0 0
    %230 = vmatprep.mubr.bf16.mxu0 0
    %231 = vmatmul.mubr.bf16.gmra.mrb[0].mxu0 %v143
    %v232 = vpop.f32.mrb[0].mxu0
    %v233 = vadd.f32 0.0, %v232
    %v234 = vpop.f32.mrb[0].mxu0
    %v235 = vpop.f32.mrb[0].mxu0
    %v236 = vadd.f32 0.0, %v235
    %v237 = vpop.f32.mrb[0].mxu0
    %238 = vdwg.mxu0
    %v243 = vunpack.c.l.b16 %v122
    %v244 = vunpack.c.l.b16 %v123
    %v245 = vunpack.c.l.b16 %v124
    %v246 = vunpack.c.l.b16 %v125
    %v247 = vpack.c.b16 %v244, %v243
    %v248 = vpack.c.b16 %v246, %v245
    %251 = vmatprep.subr.bf16.mxu0 0
    %252 = vmatpush1.bf16.msra.mxu0 %v247
    %253 = vmatprep.subr.bf16.mxu0 0
    %254 = vmatpush1.bf16.msra.mxu0 %v248
    %255 = vmatprep.subr.bf16.mxu0 0
    %256 = vmatpush1.bf16.msra.mxu0 0
    %257 = vmatprep.subr.bf16.mxu0 0
    %258 = vmatpush1.bf16.msra.mxu0 0
    %259 = vmatprep.subr.bf16.mxu0 0
    %260 = vmatpush1.bf16.msra.mxu0 0
    %261 = vmatprep.subr.bf16.mxu0 0
    %262 = vmatpush1.bf16.msra.mxu0 0
    %263 = vmatprep.subr.bf16.mxu0 0
    %264 = vmatpush1.bf16.msra.mxu0 0
    %265 = vmatprep.subr.bf16.mxu0 0
    %266 = vmatpush1.bf16.msra.mxu0 0
    %267 = vmatprep.subr.bf16.mxu0 0
    %268 = vmatpush1.bf16.msra.mxu0 0
    %269 = vmatprep.subr.bf16.mxu0 0
    %270 = vmatpush1.bf16.msra.mxu0 0
    %271 = vmatprep.subr.bf16.mxu0 0
    %272 = vmatpush1.bf16.msra.mxu0 0
    %273 = vmatprep.subr.bf16.mxu0 0
    %274 = vmatpush1.bf16.msra.mxu0 0
    %275 = vmatprep.subr.bf16.mxu0 0
    %276 = vmatpush1.bf16.msra.mxu0 0
    %277 = vmatprep.subr.bf16.mxu0 0
    %278 = vmatpush1.bf16.msra.mxu0 0
    %279 = vmatprep.subr.bf16.mxu0 0
    %280 = vmatpush1.bf16.msra.mxu0 0
    %281 = vmatprep.subr.bf16.mxu0 0
    %282 = vmatpush1.bf16.msra.mxu0 0
    %283 = vmatprep.mubr.bf16.mxu0 0
    %284 = vmatmul.mubr.bf16.gmra.mrb[0].mxu0 %v143
    %v285 = vpop.f32.mrb[0].mxu0
    %v286 = vadd.f32 0.0, %v285
    %v287 = vpop.f32.mrb[0].mxu0
    %v288 = vpop.f32.mrb[0].mxu0
    %v289 = vadd.f32 0.0, %v288
    %v290 = vpop.f32.mrb[0].mxu0
    %291 = vdwg.mxu0
    %v296 = vunpack.c.l.b16 %v126
    %v297 = vunpack.c.l.b16 %v127
    %v298 = vunpack.c.l.b16 %v128
    %v299 = vunpack.c.l.b16 %v129
    %v300 = vpack.c.b16 %v297, %v296
    %v301 = vpack.c.b16 %v299, %v298
    %304 = vmatprep.subr.bf16.mxu0 0
    %305 = vmatpush1.bf16.msra.mxu0 %v300
    %306 = vmatprep.subr.bf16.mxu0 0
    %307 = vmatpush1.bf16.msra.mxu0 %v301
    %308 = vmatprep.subr.bf16.mxu0 0
    %309 = vmatpush1.bf16.msra.mxu0 0
    %310 = vmatprep.subr.bf16.mxu0 0
    %311 = vmatpush1.bf16.msra.mxu0 0
    %312 = vmatprep.subr.bf16.mxu0 0
    %313 = vmatpush1.bf16.msra.mxu0 0
    %314 = vmatprep.subr.bf16.mxu0 0
    %315 = vmatpush1.bf16.msra.mxu0 0
    %316 = vmatprep.subr.bf16.mxu0 0
    %317 = vmatpush1.bf16.msra.mxu0 0
    %318 = vmatprep.subr.bf16.mxu0 0
    %319 = vmatpush1.bf16.msra.mxu0 0
    %320 = vmatprep.subr.bf16.mxu0 0
    %321 = vmatpush1.bf16.msra.mxu0 0
    %322 = vmatprep.subr.bf16.mxu0 0
    %323 = vmatpush1.bf16.msra.mxu0 0
    %324 = vmatprep.subr.bf16.mxu0 0
    %325 = vmatpush1.bf16.msra.mxu0 0
    %326 = vmatprep.subr.bf16.mxu0 0
    %327 = vmatpush1.bf16.msra.mxu0 0
    %328 = vmatprep.subr.bf16.mxu0 0
    %329 = vmatpush1.bf16.msra.mxu0 0
    %330 = vmatprep.subr.bf16.mxu0 0
    %331 = vmatpush1.bf16.msra.mxu0 0
    %332 = vmatprep.subr.bf16.mxu0 0
    %333 = vmatpush1.bf16.msra.mxu0 0
    %334 = vmatprep.subr.bf16.mxu0 0
    %335 = vmatpush1.bf16.msra.mxu0 0
    %336 = vmatprep.mubr.bf16.mxu0 0
    %337 = vmatmul.mubr.bf16.gmra.mrb[0].mxu0 %v143
    %v338 = vpop.f32.mrb[0].mxu0
    %v339 = vadd.f32 0.0, %v338
    %v340 = vpop.f32.mrb[0].mxu0
    %v341 = vpop.f32.mrb[0].mxu0
    %v342 = vadd.f32 0.0, %v341
    %v343 = vpop.f32.mrb[0].mxu0
    %344 = vdwg.mxu0
    %v345 = vpack.c.bf16 %v183, %v180
    %v346 = vpack.c.bf16 %v236, %v233
    %v347 = vpack.c.bf16 %v289, %v286
    %v348 = vpack.c.bf16 %v342, %v339
    %v350 = vsel %vm89, %v345, 0
    %352 = vmatprep.subr.bf16.mxu0 0
    %353 = vmatpush1.bf16.xpose.msra.mxu0 %v143
    %354 = vmatprep.subr.bf16.mxu0 0
    %355 = vmatpush1.bf16.xpose.msra.mxu0 0
    %356 = vmatprep.subr.bf16.mxu0 0
    %357 = vmatpush1.bf16.xpose.msra.mxu0 0
    %358 = vmatprep.subr.bf16.mxu0 0
    %359 = vmatpush1.bf16.xpose.msra.mxu0 0
    %360 = vmatprep.subr.bf16.mxu0 0
    %361 = vmatpush1.bf16.xpose.msra.mxu0 0
    %362 = vmatprep.subr.bf16.mxu0 0
    %363 = vmatpush1.bf16.xpose.msra.mxu0 0
    %364 = vmatprep.subr.bf16.mxu0 0
    %365 = vmatpush1.bf16.xpose.msra.mxu0 0
    %366 = vmatprep.subr.bf16.mxu0 0
    %367 = vmatpush1.bf16.xpose.msra.mxu0 0
    %368 = vmatprep.subr.bf16.mxu0 0
    %369 = vmatpush1.bf16.xpose.msra.mxu0 0
    %370 = vmatprep.subr.bf16.mxu0 0
    %371 = vmatpush1.bf16.xpose.msra.mxu0 0
    %372 = vmatprep.subr.bf16.mxu0 0
    %373 = vmatpush1.bf16.xpose.msra.mxu0 0
    %374 = vmatprep.subr.bf16.mxu0 0
    %375 = vmatpush1.bf16.xpose.msra.mxu0 0
    %376 = vmatprep.subr.bf16.mxu0 0
    %377 = vmatpush1.bf16.xpose.msra.mxu0 0
    %378 = vmatprep.subr.bf16.mxu0 0
    %379 = vmatpush1.bf16.xpose.msra.mxu0 0
    %380 = vmatprep.subr.bf16.mxu0 0
    %381 = vmatpush1.bf16.xpose.msra.mxu0 0
    %382 = vmatprep.subr.bf16.mxu0 0
    %383 = vmatpush1.bf16.xpose.msra.mxu0 0
    %384 = vmatprep.mubr.bf16.mxu0 0
    %385 = vmatmul.mubr.bf16.gmra.mrb[0].mxu0 %v350
    %v386 = vpop.f32.mrb[0].mxu0
    %v387 = vadd.f32 %v78, %v386
    %v388 = vpop.f32.mrb[0].mxu0
    %v389 = vpop.f32.mrb[0].mxu0
    %v390 = vadd.f32 %v79, %v389
    %v391 = vpop.f32.mrb[0].mxu0
    %392 = vdwg.mxu0
    %v394 = vsel %vm89, %v346, 0
    %396 = vmatprep.subr.bf16.mxu0 0
    %397 = vmatpush1.bf16.xpose.msra.mxu0 %v143
    %398 = vmatprep.subr.bf16.mxu0 0
    %399 = vmatpush1.bf16.xpose.msra.mxu0 0
    %400 = vmatprep.subr.bf16.mxu0 0
    %401 = vmatpush1.bf16.xpose.msra.mxu0 0
    %402 = vmatprep.subr.bf16.mxu0 0
    %403 = vmatpush1.bf16.xpose.msra.mxu0 0
    %404 = vmatprep.subr.bf16.mxu0 0
    %405 = vmatpush1.bf16.xpose.msra.mxu0 0
    %406 = vmatprep.subr.bf16.mxu0 0
    %407 = vmatpush1.bf16.xpose.msra.mxu0 0
    %408 = vmatprep.subr.bf16.mxu0 0
    %409 = vmatpush1.bf16.xpose.msra.mxu0 0
    %410 = vmatprep.subr.bf16.mxu0 0
    %411 = vmatpush1.bf16.xpose.msra.mxu0 0
    %412 = vmatprep.subr.bf16.mxu0 0
    %413 = vmatpush1.bf16.xpose.msra.mxu0 0
    %414 = vmatprep.subr.bf16.mxu0 0
    %415 = vmatpush1.bf16.xpose.msra.mxu0 0
    %416 = vmatprep.subr.bf16.mxu0 0
    %417 = vmatpush1.bf16.xpose.msra.mxu0 0
    %418 = vmatprep.subr.bf16.mxu0 0
    %419 = vmatpush1.bf16.xpose.msra.mxu0 0
    %420 = vmatprep.subr.bf16.mxu0 0
    %421 = vmatpush1.bf16.xpose.msra.mxu0 0
    %422 = vmatprep.subr.bf16.mxu0 0
    %423 = vmatpush1.bf16.xpose.msra.mxu0 0
    %424 = vmatprep.subr.bf16.mxu0 0
    %425 = vmatpush1.bf16.xpose.msra.mxu0 0
    %426 = vmatprep.subr.bf16.mxu0 0
    %427 = vmatpush1.bf16.xpose.msra.mxu0 0
    %428 = vmatprep.mubr.bf16.mxu0 0
    %429 = vmatmul.mubr.bf16.gmra.mrb[0].mxu0 %v394
    %v430 = vpop.f32.mrb[0].mxu0
    %v431 = vadd.f32 %v80, %v430
    %v432 = vpop.f32.mrb[0].mxu0
    %v433 = vpop.f32.mrb[0].mxu0
    %v434 = vadd.f32 %v81, %v433
    %v435 = vpop.f32.mrb[0].mxu0
    %436 = vdwg.mxu0
    %v438 = vsel %vm89, %v347, 0
    %440 = vmatprep.subr.bf16.mxu0 0
    %441 = vmatpush1.bf16.xpose.msra.mxu0 %v143
    %442 = vmatprep.subr.bf16.mxu0 0
    %443 = vmatpush1.bf16.xpose.msra.mxu0 0
    %444 = vmatprep.subr.bf16.mxu0 0
    %445 = vmatpush1.bf16.xpose.msra.mxu0 0
    %446 = vmatprep.subr.bf16.mxu0 0
    %447 = vmatpush1.bf16.xpose.msra.mxu0 0
    %448 = vmatprep.subr.bf16.mxu0 0
    %449 = vmatpush1.bf16.xpose.msra.mxu0 0
    %450 = vmatprep.subr.bf16.mxu0 0
    %451 = vmatpush1.bf16.xpose.msra.mxu0 0
    %452 = vmatprep.subr.bf16.mxu0 0
    %453 = vmatpush1.bf16.xpose.msra.mxu0 0
    %454 = vmatprep.subr.bf16.mxu0 0
    %455 = vmatpush1.bf16.xpose.msra.mxu0 0
    %456 = vmatprep.subr.bf16.mxu0 0
    %457 = vmatpush1.bf16.xpose.msra.mxu0 0
    %458 = vmatprep.subr.bf16.mxu0 0
    %459 = vmatpush1.bf16.xpose.msra.mxu0 0
    %460 = vmatprep.subr.bf16.mxu0 0
    %461 = vmatpush1.bf16.xpose.msra.mxu0 0
    %462 = vmatprep.subr.bf16.mxu0 0
    %463 = vmatpush1.bf16.xpose.msra.mxu0 0
    %464 = vmatprep.subr.bf16.mxu0 0
    %465 = vmatpush1.bf16.xpose.msra.mxu0 0
    %466 = vmatprep.subr.bf16.mxu0 0
    %467 = vmatpush1.bf16.xpose.msra.mxu0 0
    %468 = vmatprep.subr.bf16.mxu0 0
    %469 = vmatpush1.bf16.xpose.msra.mxu0 0
    %470 = vmatprep.subr.bf16.mxu0 0
    %471 = vmatpush1.bf16.xpose.msra.mxu0 0
    %472 = vmatprep.mubr.bf16.mxu0 0
    %473 = vmatmul.mubr.bf16.gmra.mrb[0].mxu0 %v438
    %v474 = vpop.f32.mrb[0].mxu0
    %v475 = vadd.f32 %v82, %v474
    %v476 = vpop.f32.mrb[0].mxu0
    %v477 = vpop.f32.mrb[0].mxu0
    %v478 = vadd.f32 %v83, %v477
    %v479 = vpop.f32.mrb[0].mxu0
    %480 = vdwg.mxu0
    %v482 = vsel %vm89, %v348, 0
    %484 = vmatprep.subr.bf16.mxu0 0
    %485 = vmatpush1.bf16.xpose.msra.mxu0 %v143
    %486 = vmatprep.subr.bf16.mxu0 0
    %487 = vmatpush1.bf16.xpose.msra.mxu0 0
    %488 = vmatprep.subr.bf16.mxu0 0
    %489 = vmatpush1.bf16.xpose.msra.mxu0 0
    %490 = vmatprep.subr.bf16.mxu0 0
    %491 = vmatpush1.bf16.xpose.msra.mxu0 0
    %492 = vmatprep.subr.bf16.mxu0 0
    %493 = vmatpush1.bf16.xpose.msra.mxu0 0
    %494 = vmatprep.subr.bf16.mxu0 0
    %495 = vmatpush1.bf16.xpose.msra.mxu0 0
    %496 = vmatprep.subr.bf16.mxu0 0
    %497 = vmatpush1.bf16.xpose.msra.mxu0 0
    %498 = vmatprep.subr.bf16.mxu0 0
    %499 = vmatpush1.bf16.xpose.msra.mxu0 0
    %500 = vmatprep.subr.bf16.mxu0 0
    %501 = vmatpush1.bf16.xpose.msra.mxu0 0
    %502 = vmatprep.subr.bf16.mxu0 0
    %503 = vmatpush1.bf16.xpose.msra.mxu0 0
    %504 = vmatprep.subr.bf16.mxu0 0
    %505 = vmatpush1.bf16.xpose.msra.mxu0 0
    %506 = vmatprep.subr.bf16.mxu0 0
    %507 = vmatpush1.bf16.xpose.msra.mxu0 0
    %508 = vmatprep.subr.bf16.mxu0 0
    %509 = vmatpush1.bf16.xpose.msra.mxu0 0
    %510 = vmatprep.subr.bf16.mxu0 0
    %511 = vmatpush1.bf16.xpose.msra.mxu0 0
    %512 = vmatprep.subr.bf16.mxu0 0
    %513 = vmatpush1.bf16.xpose.msra.mxu0 0
    %514 = vmatprep.subr.bf16.mxu0 0
    %515 = vmatpush1.bf16.xpose.msra.mxu0 0
    %516 = vmatprep.mubr.bf16.mxu0 0
    %517 = vmatmul.mubr.bf16.gmra.mrb[0].mxu0 %v482
    %v518 = vpop.f32.mrb[0].mxu0
    %v519 = vadd.f32 %v84, %v518
    %v520 = vpop.f32.mrb[0].mxu0
    %v521 = vpop.f32.mrb[0].mxu0
    %v522 = vadd.f32 %v85, %v521
    %v523 = vpop.f32.mrb[0].mxu0
    %524 = vdwg.mxu0
    %vm525 = vcmask 130048
    %v526 = vsel %vm525, %v387, -inf
    %527 = vmax.xlane.f32.xlu0 %v526
    %v528 = vpop.xlane.xlu0 %527
    %v529 = vsel %vm525, %v390, -inf
    %530 = vmax.xlane.f32.xlu0 %v529
    %v531 = vpop.xlane.xlu0 %530
    %v532 = vsel %vm525, %v431, -inf
    %533 = vmax.xlane.f32.xlu0 %v532
    %v534 = vpop.xlane.xlu0 %533
    %v535 = vsel %vm525, %v434, -inf
    %536 = vmax.xlane.f32.xlu0 %v535
    %v537 = vpop.xlane.xlu0 %536
    %v538 = vsel %vm525, %v475, -inf
    %539 = vmax.xlane.f32.xlu0 %v538
    %v540 = vpop.xlane.xlu0 %539
    %v541 = vsel %vm525, %v478, -inf
    %542 = vmax.xlane.f32.xlu0 %v541
    %v543 = vpop.xlane.xlu0 %542
    %v544 = vsel %vm525, %v519, -inf
    %545 = vmax.xlane.f32.xlu0 %v544
    %v546 = vpop.xlane.xlu0 %545
    %v547 = vsel %vm525, %v522, -inf
    %548 = vmax.xlane.f32.xlu0 %v547
    %v549 = vpop.xlane.xlu0 %548
    %v550 = vsub.f32 %v387, %v528
    %v551 = vsub.f32 %v390, %v531
    %v552 = vsub.f32 %v431, %v534
    %v553 = vsub.f32 %v434, %v537
    %v554 = vsub.f32 %v475, %v540
    %v555 = vsub.f32 %v478, %v543
    %v556 = vsub.f32 %v519, %v546
    %v557 = vsub.f32 %v522, %v549
    %v558 = vmul.f32 %v550, 1.442695
    %v559 = vpow.pop %v558
    %v560 = vmul.f32 %v551, 1.442695
    %v561 = vpow.pop %v560
    %v562 = vmul.f32 %v552, 1.442695
    %v563 = vpow.pop %v562
    %v564 = vmul.f32 %v553, 1.442695
    %v565 = vpow.pop %v564
    %v566 = vmul.f32 %v554, 1.442695
    %v567 = vpow.pop %v566
    %v568 = vmul.f32 %v555, 1.442695
    %v569 = vpow.pop %v568
    %v570 = vmul.f32 %v556, 1.442695
    %v571 = vpow.pop %v570
    %v572 = vmul.f32 %v557, 1.442695
    %v573 = vpow.pop %v572
    %v574 = vsel %vm525, %v559, 0.0
    %575 = vadd.xlane.f32.xlu0 %v574
    %v576 = vpop.xlane.xlu0 %575
    %v577 = vsel %vm525, %v561, 0.0
    %578 = vadd.xlane.f32.xlu0 %v577
    %v579 = vpop.xlane.xlu0 %578
    %v580 = vsel %vm525, %v563, 0.0
    %581 = vadd.xlane.f32.xlu0 %v580
    %v582 = vpop.xlane.xlu0 %581
    %v583 = vsel %vm525, %v565, 0.0
    %584 = vadd.xlane.f32.xlu0 %v583
    %v585 = vpop.xlane.xlu0 %584
    %v586 = vsel %vm525, %v567, 0.0
    %587 = vadd.xlane.f32.xlu0 %v586
    %v588 = vpop.xlane.xlu0 %587
    %v589 = vsel %vm525, %v569, 0.0
    %590 = vadd.xlane.f32.xlu0 %v589
    %v591 = vpop.xlane.xlu0 %590
    %v592 = vsel %vm525, %v571, 0.0
    %593 = vadd.xlane.f32.xlu0 %v592
    %v594 = vpop.xlane.xlu0 %593
    %v595 = vsel %vm525, %v573, 0.0
    %596 = vadd.xlane.f32.xlu0 %v595
    %v597 = vpop.xlane.xlu0 %596
    %v598 = vrcp.pop %v576
    %v599 = vrcp.pop %v579
    %v600 = vrcp.pop %v582
    %v601 = vrcp.pop %v585
    %v602 = vrcp.pop %v588
    %v603 = vrcp.pop %v591
    %v604 = vrcp.pop %v594
    %v605 = vrcp.pop %v597
    %v606 = vmul.f32 %v559, %v598
    %v607 = vmul.f32 %v561, %v599
    %v608 = vmul.f32 %v563, %v600
    %v609 = vmul.f32 %v565, %v601
    %v610 = vmul.f32 %v567, %v602
    %v611 = vmul.f32 %v569, %v603
    %v612 = vmul.f32 %v571, %v604
    %v613 = vmul.f32 %v573, %v605
    %v614 = vpack.c.bf16 %v607, %v606
    %v615 = vpack.c.bf16 %v609, %v608
    %v616 = vpack.c.bf16 %v611, %v610
    %v617 = vpack.c.bf16 %v613, %v612
    %v619 = vsel %vm525, %v614, 0
    %621 = vmatprep.subr.bf16.mxu0 0
    %622 = vmatpush1.bf16.msra.mxu0 %v113
    %623 = vmatprep.subr.bf16.mxu0 0
    %624 = vmatpush1.bf16.msra.mxu0 0
    %625 = vmatprep.subr.bf16.mxu0 0
    %626 = vmatpush1.bf16.msra.mxu0 0
    %627 = vmatprep.subr.bf16.mxu0 0
    %628 = vmatpush1.bf16.msra.mxu0 0
    %629 = vmatprep.subr.bf16.mxu0 0
    %630 = vmatpush1.bf16.msra.mxu0 0
    %631 = vmatprep.subr.bf16.mxu0 0
    %632 = vmatpush1.bf16.msra.mxu0 0
    %633 = vmatprep.subr.bf16.mxu0 0
    %634 = vmatpush1.bf16.msra.mxu0 0
    %635 = vmatprep.subr.bf16.mxu0 0
    %636 = vmatpush1.bf16.msra.mxu0 0
    %637 = vmatprep.subr.bf16.mxu0 0
    %638 = vmatpush1.bf16.msra.mxu0 0
    %639 = vmatprep.subr.bf16.mxu0 0
    %640 = vmatpush1.bf16.msra.mxu0 0
    %641 = vmatprep.subr.bf16.mxu0 0
    %642 = vmatpush1.bf16.msra.mxu0 0
    %643 = vmatprep.subr.bf16.mxu0 0
    %644 = vmatpush1.bf16.msra.mxu0 0
    %645 = vmatprep.subr.bf16.mxu0 0
    %646 = vmatpush1.bf16.msra.mxu0 0
    %647 = vmatprep.subr.bf16.mxu0 0
    %648 = vmatpush1.bf16.msra.mxu0 0
    %649 = vmatprep.subr.bf16.mxu0 0
    %650 = vmatpush1.bf16.msra.mxu0 0
    %651 = vmatprep.subr.bf16.mxu0 0
    %652 = vmatpush1.bf16.msra.mxu0 0
    %653 = vmatprep.mubr.bf16.mxu0 0
    %654 = vmatmul.mubr.bf16.gmra.mrb[0].mxu0 %v619
    %v655 = vpop.f32.mrb[0].mxu0
    %v656 = vadd.f32 0.0, %v655
    %v657 = vpop.f32.mrb[0].mxu0
    %v658 = vpop.f32.mrb[0].mxu0
    %v659 = vadd.f32 0.0, %v658
    %v660 = vpop.f32.mrb[0].mxu0
    %661 = vdwg.mxu0
    %v663 = vsel %vm525, %v615, 0
    %665 = vmatprep.subr.bf16.mxu0 0
    %666 = vmatpush1.bf16.msra.mxu0 %v113
    %667 = vmatprep.subr.bf16.mxu0 0
    %668 = vmatpush1.bf16.msra.mxu0 0
    %669 = vmatprep.subr.bf16.mxu0 0
    %670 = vmatpush1.bf16.msra.mxu0 0
    %671 = vmatprep.subr.bf16.mxu0 0
    %672 = vmatpush1.bf16.msra.mxu0 0
    %673 = vmatprep.subr.bf16.mxu0 0
    %674 = vmatpush1.bf16.msra.mxu0 0
    %675 = vmatprep.subr.bf16.mxu0 0
    %676 = vmatpush1.bf16.msra.mxu0 0
    %677 = vmatprep.subr.bf16.mxu0 0
    %678 = vmatpush1.bf16.msra.mxu0 0
    %679 = vmatprep.subr.bf16.mxu0 0
    %680 = vmatpush1.bf16.msra.mxu0 0
    %681 = vmatprep.subr.bf16.mxu0 0
    %682 = vmatpush1.bf16.msra.mxu0 0
    %683 = vmatprep.subr.bf16.mxu0 0
    %684 = vmatpush1.bf16.msra.mxu0 0
    %685 = vmatprep.subr.bf16.mxu0 0
    %686 = vmatpush1.bf16.msra.mxu0 0
    %687 = vmatprep.subr.bf16.mxu0 0
    %688 = vmatpush1.bf16.msra.mxu0 0
    %689 = vmatprep.subr.bf16.mxu0 0
    %690 = vmatpush1.bf16.msra.mxu0 0
    %691 = vmatprep.subr.bf16.mxu0 0
    %692 = vmatpush1.bf16.msra.mxu0 0
    %693 = vmatprep.subr.bf16.mxu0 0
    %694 = vmatpush1.bf16.msra.mxu0 0
    %695 = vmatprep.subr.bf16.mxu0 0
    %696 = vmatpush1.bf16.msra.mxu0 0
    %697 = vmatprep.mubr.bf16.mxu0 0
    %698 = vmatmul.mubr.bf16.gmra.mrb[0].mxu0 %v663
    %v699 = vpop.f32.mrb[0].mxu0
    %v700 = vadd.f32 0.0, %v699
    %v701 = vpop.f32.mrb[0].mxu0
    %v702 = vpop.f32.mrb[0].mxu0
    %v703 = vadd.f32 0.0, %v702
    %v704 = vpop.f32.mrb[0].mxu0
    %705 = vdwg.mxu0
    %v707 = vsel %vm525, %v616, 0
    %709 = vmatprep.subr.bf16.mxu0 0
    %710 = vmatpush1.bf16.msra.mxu0 %v113
    %711 = vmatprep.subr.bf16.mxu0 0
    %712 = vmatpush1.bf16.msra.mxu0 0
    %713 = vmatprep.subr.bf16.mxu0 0
    %714 = vmatpush1.bf16.msra.mxu0 0
    %715 = vmatprep.subr.bf16.mxu0 0
    %716 = vmatpush1.bf16.msra.mxu0 0
    %717 = vmatprep.subr.bf16.mxu0 0
    %718 = vmatpush1.bf16.msra.mxu0 0
    %719 = vmatprep.subr.bf16.mxu0 0
    %720 = vmatpush1.bf16.msra.mxu0 0
    %721 = vmatprep.subr.bf16.mxu0 0
    %722 = vmatpush1.bf16.msra.mxu0 0
    %723 = vmatprep.subr.bf16.mxu0 0
    %724 = vmatpush1.bf16.msra.mxu0 0
    %725 = vmatprep.subr.bf16.mxu0 0
    %726 = vmatpush1.bf16.msra.mxu0 0
    %727 = vmatprep.subr.bf16.mxu0 0
    %728 = vmatpush1.bf16.msra.mxu0 0
    %729 = vmatprep.subr.bf16.mxu0 0
    %730 = vmatpush1.bf16.msra.mxu0 0
    %731 = vmatprep.subr.bf16.mxu0 0
    %732 = vmatpush1.bf16.msra.mxu0 0
    %733 = vmatprep.subr.bf16.mxu0 0
    %734 = vmatpush1.bf16.msra.mxu0 0
    %735 = vmatprep.subr.bf16.mxu0 0
    %736 = vmatpush1.bf16.msra.mxu0 0
    %737 = vmatprep.subr.bf16.mxu0 0
    %738 = vmatpush1.bf16.msra.mxu0 0
    %739 = vmatprep.subr.bf16.mxu0 0
    %740 = vmatpush1.bf16.msra.mxu0 0
    %741 = vmatprep.mubr.bf16.mxu0 0
    %742 = vmatmul.mubr.bf16.gmra.mrb[0].mxu0 %v707
    %v743 = vpop.f32.mrb[0].mxu0
    %v744 = vadd.f32 0.0, %v743
    %v745 = vpop.f32.mrb[0].mxu0
    %v746 = vpop.f32.mrb[0].mxu0
    %v747 = vadd.f32 0.0, %v746
    %v748 = vpop.f32.mrb[0].mxu0
    %749 = vdwg.mxu0
    %v751 = vsel %vm525, %v617, 0
    %753 = vmatprep.subr.bf16.mxu0 0
    %754 = vmatpush1.bf16.msra.mxu0 %v113
    %755 = vmatprep.subr.bf16.mxu0 0
    %756 = vmatpush1.bf16.msra.mxu0 0
    %757 = vmatprep.subr.bf16.mxu0 0
    %758 = vmatpush1.bf16.msra.mxu0 0
    %759 = vmatprep.subr.bf16.mxu0 0
    %760 = vmatpush1.bf16.msra.mxu0 0
    %761 = vmatprep.subr.bf16.mxu0 0
    %762 = vmatpush1.bf16.msra.mxu0 0
    %763 = vmatprep.subr.bf16.mxu0 0
    %764 = vmatpush1.bf16.msra.mxu0 0
    %765 = vmatprep.subr.bf16.mxu0 0
    %766 = vmatpush1.bf16.msra.mxu0 0
    %767 = vmatprep.subr.bf16.mxu0 0
    %768 = vmatpush1.bf16.msra.mxu0 0
    %769 = vmatprep.subr.bf16.mxu0 0
    %770 = vmatpush1.bf16.msra.mxu0 0
    %771 = vmatprep.subr.bf16.mxu0 0
    %772 = vmatpush1.bf16.msra.mxu0 0
    %773 = vmatprep.subr.bf16.mxu0 0
    %774 = vmatpush1.bf16.msra.mxu0 0
    %775 = vmatprep.subr.bf16.mxu0 0
    %776 = vmatpush1.bf16.msra.mxu0 0
    %777 = vmatprep.subr.bf16.mxu0 0
    %778 = vmatpush1.bf16.msra.mxu0 0
    %779 = vmatprep.subr.bf16.mxu0 0
    %780 = vmatpush1.bf16.msra.mxu0 0
    %781 = vmatprep.subr.bf16.mxu0 0
    %782 = vmatpush1.bf16.msra.mxu0 0
    %783 = vmatprep.subr.bf16.mxu0 0
    %784 = vmatpush1.bf16.msra.mxu0 0
    %785 = vmatprep.mubr.bf16.mxu0 0
    %786 = vmatmul.mubr.bf16.gmra.mrb[0].mxu0 %v751
    %v787 = vpop.f32.mrb[0].mxu0
    %v788 = vadd.f32 0.0, %v787
    %v789 = vpop.f32.mrb[0].mxu0
    %v790 = vpop.f32.mrb[0].mxu0
    %v791 = vadd.f32 0.0, %v790
    %v792 = vpop.f32.mrb[0].mxu0
    %793 = vdwg.mxu0
    %v794 = vpack.c.bf16 %v659, %v656
    %v795 = vpack.c.bf16 %v703, %v700
    %v796 = vpack.c.bf16 %v747, %v744
    %v797 = vpack.c.bf16 %v791, %v788
    %v798 = vld [vmem:[#allocation8] sm:$0xf]
    %v799 = vld [vmem:[#allocation8 + $0x4] sm:$0xf]
    %v800 = vld [vmem:[#allocation8 + $0x8] sm:$0xf]
    %v801 = vld [vmem:[#allocation8 + $0xc] sm:$0xf]
    %v802 = vld [vmem:[#allocation8 + $0x10] sm:$0xf]
    %v803 = vld [vmem:[#allocation8 + $0x14] sm:$0xf]
    %v804 = vld [vmem:[#allocation8 + $0x18] sm:$0xf]
    %v805 = vld [vmem:[#allocation8 + $0x1c] sm:$0xf]
    %v806 = vld [vmem:[#allocation8 + $0x20] sm:$0xf]
    %v807 = vld [vmem:[#allocation8 + $0x24] sm:$0xf]
    %v808 = vld [vmem:[#allocation8 + $0x28] sm:$0xf]
    %v809 = vld [vmem:[#allocation8 + $0x2c] sm:$0xf]
    %v810 = vld [vmem:[#allocation8 + $0x30] sm:$0xf]
    %v811 = vld [vmem:[#allocation8 + $0x34] sm:$0xf]
    %v812 = vld [vmem:[#allocation8 + $0x38] sm:$0xf]
    %v813 = vld [vmem:[#allocation8 + $0x3c] sm:$0xf]
    %v818 = vunpack.c.l.b16 %v798
    %v819 = vunpack.c.l.b16 %v799
    %v820 = vunpack.c.l.b16 %v800
    %v821 = vunpack.c.l.b16 %v801
    %v822 = vpack.c.b16 %v819, %v818
    %v823 = vpack.c.b16 %v821, %v820
    %v827 = vsel %vm89, %v794, 0
    %829 = vmatprep.subr.bf16.mxu0 0
    %830 = vmatpush1.bf16.msra.mxu0 %v822
    %831 = vmatprep.subr.bf16.mxu0 0
    %832 = vmatpush1.bf16.msra.mxu0 %v823
    %833 = vmatprep.subr.bf16.mxu0 0
    %834 = vmatpush1.bf16.msra.mxu0 0
    %835 = vmatprep.subr.bf16.mxu0 0
    %836 = vmatpush1.bf16.msra.mxu0 0
    %837 = vmatprep.subr.bf16.mxu0 0
    %838 = vmatpush1.bf16.msra.mxu0 0
    %839 = vmatprep.subr.bf16.mxu0 0
    %840 = vmatpush1.bf16.msra.mxu0 0
    %841 = vmatprep.subr.bf16.mxu0 0
    %842 = vmatpush1.bf16.msra.mxu0 0
    %843 = vmatprep.subr.bf16.mxu0 0
    %844 = vmatpush1.bf16.msra.mxu0 0
    %845 = vmatprep.subr.bf16.mxu0 0
    %846 = vmatpush1.bf16.msra.mxu0 0
    %847 = vmatprep.subr.bf16.mxu0 0
    %848 = vmatpush1.bf16.msra.mxu0 0
    %849 = vmatprep.subr.bf16.mxu0 0
    %850 = vmatpush1.bf16.msra.mxu0 0
    %851 = vmatprep.subr.bf16.mxu0 0
    %852 = vmatpush1.bf16.msra.mxu0 0
    %853 = vmatprep.subr.bf16.mxu0 0
    %854 = vmatpush1.bf16.msra.mxu0 0
    %855 = vmatprep.subr.bf16.mxu0 0
    %856 = vmatpush1.bf16.msra.mxu0 0
    %857 = vmatprep.subr.bf16.mxu0 0
    %858 = vmatpush1.bf16.msra.mxu0 0
    %859 = vmatprep.subr.bf16.mxu0 0
    %860 = vmatpush1.bf16.msra.mxu0 0
    %861 = vmatprep.mubr.bf16.mxu0 0
    %862 = vmatmul.mubr.bf16.gmra.mrb[0].mxu0 %v827
    %v863 = vpop.f32.mrb[0].mxu0
    %v864 = vadd.f32 0.0, %v863
    %v865 = vpop.f32.mrb[0].mxu0
    %v866 = vpop.f32.mrb[0].mxu0
    %v867 = vadd.f32 0.0, %v866
    %v868 = vpop.f32.mrb[0].mxu0
    %869 = vdwg.mxu0
    %v874 = vunpack.c.l.b16 %v802
    %v875 = vunpack.c.l.b16 %v803
    %v876 = vunpack.c.l.b16 %v804
    %v877 = vunpack.c.l.b16 %v805
    %v878 = vpack.c.b16 %v875, %v874
    %v879 = vpack.c.b16 %v877, %v876
    %v883 = vsel %vm89, %v795, 0
    %885 = vmatprep.subr.bf16.mxu0 0
    %886 = vmatpush1.bf16.msra.mxu0 %v878
    %887 = vmatprep.subr.bf16.mxu0 0
    %888 = vmatpush1.bf16.msra.mxu0 %v879
    %889 = vmatprep.subr.bf16.mxu0 0
    %890 = vmatpush1.bf16.msra.mxu0 0
    %891 = vmatprep.subr.bf16.mxu0 0
    %892 = vmatpush1.bf16.msra.mxu0 0
    %893 = vmatprep.subr.bf16.mxu0 0
    %894 = vmatpush1.bf16.msra.mxu0 0
    %895 = vmatprep.subr.bf16.mxu0 0
    %896 = vmatpush1.bf16.msra.mxu0 0
    %897 = vmatprep.subr.bf16.mxu0 0
    %898 = vmatpush1.bf16.msra.mxu0 0
    %899 = vmatprep.subr.bf16.mxu0 0
    %900 = vmatpush1.bf16.msra.mxu0 0
    %901 = vmatprep.subr.bf16.mxu0 0
    %902 = vmatpush1.bf16.msra.mxu0 0
    %903 = vmatprep.subr.bf16.mxu0 0
    %904 = vmatpush1.bf16.msra.mxu0 0
    %905 = vmatprep.subr.bf16.mxu0 0
    %906 = vmatpush1.bf16.msra.mxu0 0
    %907 = vmatprep.subr.bf16.mxu0 0
    %908 = vmatpush1.bf16.msra.mxu0 0
    %909 = vmatprep.subr.bf16.mxu0 0
    %910 = vmatpush1.bf16.msra.mxu0 0
    %911 = vmatprep.subr.bf16.mxu0 0
    %912 = vmatpush1.bf16.msra.mxu0 0
    %913 = vmatprep.subr.bf16.mxu0 0
    %914 = vmatpush1.bf16.msra.mxu0 0
    %915 = vmatprep.subr.bf16.mxu0 0
    %916 = vmatpush1.bf16.msra.mxu0 0
    %917 = vmatprep.mubr.bf16.mxu0 0
    %918 = vmatmul.mubr.bf16.gmra.mrb[0].mxu0 %v883
    %v919 = vpop.f32.mrb[0].mxu0
    %v920 = vadd.f32 0.0, %v919
    %v921 = vpop.f32.mrb[0].mxu0
    %v922 = vpop.f32.mrb[0].mxu0
    %v923 = vadd.f32 0.0, %v922
    %v924 = vpop.f32.mrb[0].mxu0
    %925 = vdwg.mxu0
    %v930 = vunpack.c.l.b16 %v806
    %v931 = vunpack.c.l.b16 %v807
    %v932 = vunpack.c.l.b16 %v808
    %v933 = vunpack.c.l.b16 %v809
    %v934 = vpack.c.b16 %v931, %v930
    %v935 = vpack.c.b16 %v933, %v932
    %v939 = vsel %vm89, %v796, 0
    %941 = vmatprep.subr.bf16.mxu0 0
    %942 = vmatpush1.bf16.msra.mxu0 %v934
    %943 = vmatprep.subr.bf16.mxu0 0
    %944 = vmatpush1.bf16.msra.mxu0 %v935
    %945 = vmatprep.subr.bf16.mxu0 0
    %946 = vmatpush1.bf16.msra.mxu0 0
    %947 = vmatprep.subr.bf16.mxu0 0
    %948 = vmatpush1.bf16.msra.mxu0 0
    %949 = vmatprep.subr.bf16.mxu0 0
    %950 = vmatpush1.bf16.msra.mxu0 0
    %951 = vmatprep.subr.bf16.mxu0 0
    %952 = vmatpush1.bf16.msra.mxu0 0
    %953 = vmatprep.subr.bf16.mxu0 0
    %954 = vmatpush1.bf16.msra.mxu0 0
    %955 = vmatprep.subr.bf16.mxu0 0
    %956 = vmatpush1.bf16.msra.mxu0 0
    %957 = vmatprep.subr.bf16.mxu0 0
    %958 = vmatpush1.bf16.msra.mxu0 0
    %959 = vmatprep.subr.bf16.mxu0 0
    %960 = vmatpush1.bf16.msra.mxu0 0
    %961 = vmatprep.subr.bf16.mxu0 0
    %962 = vmatpush1.bf16.msra.mxu0 0
    %963 = vmatprep.subr.bf16.mxu0 0
    %964 = vmatpush1.bf16.msra.mxu0 0
    %965 = vmatprep.subr.bf16.mxu0 0
    %966 = vmatpush1.bf16.msra.mxu0 0
    %967 = vmatprep.subr.bf16.mxu0 0
    %968 = vmatpush1.bf16.msra.mxu0 0
    %969 = vmatprep.subr.bf16.mxu0 0
    %970 = vmatpush1.bf16.msra.mxu0 0
    %971 = vmatprep.subr.bf16.mxu0 0
    %972 = vmatpush1.bf16.msra.mxu0 0
    %973 = vmatprep.mubr.bf16.mxu0 0
    %974 = vmatmul.mubr.bf16.gmra.mrb[0].mxu0 %v939
    %v975 = vpop.f32.mrb[0].mxu0
    %v976 = vadd.f32 0.0, %v975
    %v977 = vpop.f32.mrb[0].mxu0
    %v978 = vpop.f32.mrb[0].mxu0
    %v979 = vadd.f32 0.0, %v978
    %v980 = vpop.f32.mrb[0].mxu0
    %981 = vdwg.mxu0
    %v986 = vunpack.c.l.b16 %v810
    %v987 = vunpack.c.l.b16 %v811
    %v988 = vunpack.c.l.b16 %v812
    %v989 = vunpack.c.l.b16 %v813
    %v990 = vpack.c.b16 %v987, %v986
    %v991 = vpack.c.b16 %v989, %v988
    %v995 = vsel %vm89, %v797, 0
    %997 = vmatprep.subr.bf16.mxu0 0
    %998 = vmatpush1.bf16.msra.mxu0 %v990
    %999 = vmatprep.subr.bf16.mxu0 0
    %1000 = vmatpush1.bf16.msra.mxu0 %v991
    %1001 = vmatprep.subr.bf16.mxu0 0
    %1002 = vmatpush1.bf16.msra.mxu0 0
    %1003 = vmatprep.subr.bf16.mxu0 0
    %1004 = vmatpush1.bf16.msra.mxu0 0
    %1005 = vmatprep.subr.bf16.mxu0 0
    %1006 = vmatpush1.bf16.msra.mxu0 0
    %1007 = vmatprep.subr.bf16.mxu0 0
    %1008 = vmatpush1.bf16.msra.mxu0 0
    %1009 = vmatprep.subr.bf16.mxu0 0
    %1010 = vmatpush1.bf16.msra.mxu0 0
    %1011 = vmatprep.subr.bf16.mxu0 0
    %1012 = vmatpush1.bf16.msra.mxu0 0
    %1013 = vmatprep.subr.bf16.mxu0 0
    %1014 = vmatpush1.bf16.msra.mxu0 0
    %1015 = vmatprep.subr.bf16.mxu0 0
    %1016 = vmatpush1.bf16.msra.mxu0 0
    %1017 = vmatprep.subr.bf16.mxu0 0
    %1018 = vmatpush1.bf16.msra.mxu0 0
    %1019 = vmatprep.subr.bf16.mxu0 0
    %1020 = vmatpush1.bf16.msra.mxu0 0
    %1021 = vmatprep.subr.bf16.mxu0 0
    %1022 = vmatpush1.bf16.msra.mxu0 0
    %1023 = vmatprep.subr.bf16.mxu0 0
    %1024 = vmatpush1.bf16.msra.mxu0 0
    %1025 = vmatprep.subr.bf16.mxu0 0
    %1026 = vmatpush1.bf16.msra.mxu0 0
    %1027 = vmatprep.subr.bf16.mxu0 0
    %1028 = vmatpush1.bf16.msra.mxu0 0
    %1029 = vmatprep.mubr.bf16.mxu0 0
    %1030 = vmatmul.mubr.bf16.gmra.mrb[0].mxu0 %v995
    %v1031 = vpop.f32.mrb[0].mxu0
    %v1032 = vadd.f32 0.0, %v1031
    %v1033 = vpop.f32.mrb[0].mxu0
    %v1034 = vpop.f32.mrb[0].mxu0
    %v1035 = vadd.f32 0.0, %v1034
    %v1036 = vpop.f32.mrb[0].mxu0
    %1037 = vdwg.mxu0
    %v1038 = vsel %vm89, %v864, 0.0
    %v1039 = vsel %vm89, %v920, 0.0
    %v1040 = vadd.f32 %v1038, %v1039
    %v1041 = vsel %vm89, %v976, 0.0
    %v1042 = vadd.f32 %v1040, %v1041
    %v1043 = vsel %vm89, %v1032, 0.0
    %v1044 = vadd.f32 %v1042, %v1043
    %v1045 = vsel %vm89, %v867, 0.0
    %v1046 = vsel %vm89, %v923, 0.0
    %v1047 = vadd.f32 %v1045, %v1046
    %v1048 = vsel %vm89, %v979, 0.0
    %v1049 = vadd.f32 %v1047, %v1048
    %v1050 = vsel %vm89, %v1035, 0.0
    %v1051 = vadd.f32 %v1049, %v1050
    %v1052 = vadd.f32 %v76, %v1044
    %v1053 = vadd.f32 %v77, %v1051
    %s1054 = scalar_lea.vmem %s4, 2
    %v1055 = vld [vmem:[%s1054] sm:$0x1]
    %v1056 = vmul.f32 %v1052, %v1052
    %v1057 = vmul.f32 %v1053, %v1053
    %v1058 = vsel %vm89, %v1056, 0.0
    %1059 = vadd.xlane.f32.xlu0 %v1058
    %v1060 = vpop.xlane.xlu0 %1059
    %v1061 = vsel %vm89, %v1057, 0.0
    %1062 = vadd.xlane.f32.xlu0 %v1061
    %v1063 = vpop.xlane.xlu0 %1062
    %v1064 = vmul.f32 %v1060, %v96
    %v1065 = vmul.f32 %v1063, %v96
    %v1066 = vadd.f32 %v1064, 1e-06
    %v1067 = vadd.f32 %v1065, 1e-06
    %v1068 = vrsqrt.pop %v1066
    %v1069 = vrsqrt.pop %v1067
    %v1070 = vmul.f32 %v1052, %v1068
    %v1071 = vmul.f32 %v1053, %v1069
    %v1073 = vlaneseq
    %v1074 = vshrl.u32 %v1073, 7
    %v1075 = vsub.s32 0, %v1074
    %v1076 = vrot.slane %v1055, %v1075
    %v1078 = vmul.f32 %v1070, %v1076
    %v1079 = vmul.f32 %v1071, %v1076
    %v1080 = vpack.c.bf16 %v1079, %v1078
    %v1081 = vld [vmem:[%s5] sm:$0xf]
    %v1082 = vld [vmem:[%s5 + $0x4] sm:$0xf]
    %v1083 = vld [vmem:[%s5 + $0x8] sm:$0xf]
    %v1084 = vld [vmem:[%s5 + $0xc] sm:$0xf]
    %v1089 = vunpack.c.l.b16 %v1081
    %v1090 = vunpack.c.l.b16 %v1082
    %v1091 = vunpack.c.l.b16 %v1083
    %v1092 = vunpack.c.l.b16 %v1084
    %v1093 = vpack.c.b16 %v1090, %v1089
    %v1094 = vpack.c.b16 %v1092, %v1091
    %v1098 = vsel %vm89, %v1080, 0
    %1100 = vmatprep.subr.bf16.mxu0 0
    %1101 = vmatpush1.bf16.msra.mxu0 %v1093
    %1102 = vmatprep.subr.bf16.mxu0 0
    %1103 = vmatpush1.bf16.msra.mxu0 %v1094
    %1104 = vmatprep.subr.bf16.mxu0 0
    %1105 = vmatpush1.bf16.msra.mxu0 0
    %1106 = vmatprep.subr.bf16.mxu0 0
    %1107 = vmatpush1.bf16.msra.mxu0 0
    %1108 = vmatprep.subr.bf16.mxu0 0
    %1109 = vmatpush1.bf16.msra.mxu0 0
    %1110 = vmatprep.subr.bf16.mxu0 0
    %1111 = vmatpush1.bf16.msra.mxu0 0
    %1112 = vmatprep.subr.bf16.mxu0 0
    %1113 = vmatpush1.bf16.msra.mxu0 0
    %1114 = vmatprep.subr.bf16.mxu0 0
    %1115 = vmatpush1.bf16.msra.mxu0 0
    %1116 = vmatprep.subr.bf16.mxu0 0
    %1117 = vmatpush1.bf16.msra.mxu0 0
    %1118 = vmatprep.subr.bf16.mxu0 0
    %1119 = vmatpush1.bf16.msra.mxu0 0
    %1120 = vmatprep.subr.bf16.mxu0 0
    %1121 = vmatpush1.bf16.msra.mxu0 0
    %1122 = vmatprep.subr.bf16.mxu0 0
    %1123 = vmatpush1.bf16.msra.mxu0 0
    %1124 = vmatprep.subr.bf16.mxu0 0
    %1125 = vmatpush1.bf16.msra.mxu0 0
    %1126 = vmatprep.subr.bf16.mxu0 0
    %1127 = vmatpush1.bf16.msra.mxu0 0
    %1128 = vmatprep.subr.bf16.mxu0 0
    %1129 = vmatpush1.bf16.msra.mxu0 0
    %1130 = vmatprep.subr.bf16.mxu0 0
    %1131 = vmatpush1.bf16.msra.mxu0 0
    %1132 = vmatprep.mubr.bf16.mxu0 0
    %1133 = vmatmul.mubr.bf16.gmra.mrb[0].mxu0 %v1098
    %v1134 = vpop.f32.mrb[0].mxu0
    %v1135 = vadd.f32 0.0, %v1134
    %v1136 = vpop.f32.mrb[0].mxu0
    %v1137 = vpop.f32.mrb[0].mxu0
    %v1138 = vadd.f32 0.0, %v1137
    %v1139 = vpop.f32.mrb[0].mxu0
    %1140 = vdwg.mxu0
    %v1141 = vmax.f32 %v1135, 0.0
    %v1142 = vmax.f32 %v1138, 0.0
    %v1143 = vpack.c.bf16 %v1142, %v1141
    %v1144 = vld [vmem:[%s6] sm:$0xf]
    %v1145 = vld [vmem:[%s6 + $0x4] sm:$0xf]
    %v1146 = vld [vmem:[%s6 + $0x8] sm:$0xf]
    %v1147 = vld [vmem:[%s6 + $0xc] sm:$0xf]
    %v1148 = vld [vmem:[%s6 + $0x10] sm:$0xf]
    %v1149 = vld [vmem:[%s6 + $0x14] sm:$0xf]
    %v1150 = vld [vmem:[%s6 + $0x18] sm:$0xf]
    %v1151 = vld [vmem:[%s6 + $0x1c] sm:$0xf]
    %v1160 = vunpack.c.l.b16 %v1144
    %v1161 = vunpack.c.l.b16 %v1145
    %v1162 = vunpack.c.l.b16 %v1146
    %v1163 = vunpack.c.l.b16 %v1147
    %v1164 = vunpack.c.l.b16 %v1148
    %v1165 = vunpack.c.l.b16 %v1149
    %v1166 = vunpack.c.l.b16 %v1150
    %v1167 = vunpack.c.l.b16 %v1151
    %v1168 = vpack.c.b16 %v1161, %v1160
    %v1169 = vpack.c.b16 %v1163, %v1162
    %v1170 = vpack.c.b16 %v1165, %v1164
    %v1171 = vpack.c.b16 %v1167, %v1166
    %vm1176 = vcmask 523264
    %v1178 = vsel %vm1176, %v1143, 0
    %1180 = vmatprep.subr.bf16.mxu0 0
    %1181 = vmatpush1.bf16.msra.mxu0 %v1168
    %1182 = vmatprep.subr.bf16.mxu0 0
    %1183 = vmatpush1.bf16.msra.mxu0 %v1169
    %1184 = vmatprep.subr.bf16.mxu0 0
    %1185 = vmatpush1.bf16.msra.mxu0 %v1170
    %1186 = vmatprep.subr.bf16.mxu0 0
    %1187 = vmatpush1.bf16.msra.mxu0 %v1171
    %1188 = vmatprep.subr.bf16.mxu0 0
    %1189 = vmatpush1.bf16.msra.mxu0 0
    %1190 = vmatprep.subr.bf16.mxu0 0
    %1191 = vmatpush1.bf16.msra.mxu0 0
    %1192 = vmatprep.subr.bf16.mxu0 0
    %1193 = vmatpush1.bf16.msra.mxu0 0
    %1194 = vmatprep.subr.bf16.mxu0 0
    %1195 = vmatpush1.bf16.msra.mxu0 0
    %1196 = vmatprep.subr.bf16.mxu0 0
    %1197 = vmatpush1.bf16.msra.mxu0 0
    %1198 = vmatprep.subr.bf16.mxu0 0
    %1199 = vmatpush1.bf16.msra.mxu0 0
    %1200 = vmatprep.subr.bf16.mxu0 0
    %1201 = vmatpush1.bf16.msra.mxu0 0
    %1202 = vmatprep.subr.bf16.mxu0 0
    %1203 = vmatpush1.bf16.msra.mxu0 0
    %1204 = vmatprep.subr.bf16.mxu0 0
    %1205 = vmatpush1.bf16.msra.mxu0 0
    %1206 = vmatprep.subr.bf16.mxu0 0
    %1207 = vmatpush1.bf16.msra.mxu0 0
    %1208 = vmatprep.subr.bf16.mxu0 0
    %1209 = vmatpush1.bf16.msra.mxu0 0
    %1210 = vmatprep.subr.bf16.mxu0 0
    %1211 = vmatpush1.bf16.msra.mxu0 0
    %1212 = vmatprep.mubr.bf16.mxu0 0
    %1213 = vmatmul.mubr.bf16.gmra.mrb[0].mxu0 %v1178
    %v1214 = vpop.f32.mrb[0].mxu0
    %v1215 = vadd.f32 0.0, %v1214
    %v1216 = vpop.f32.mrb[0].mxu0
    %v1217 = vpop.f32.mrb[0].mxu0
    %v1218 = vadd.f32 0.0, %v1217
    %v1219 = vpop.f32.mrb[0].mxu0
    %1220 = vdwg.mxu0
    %v1221 = vadd.f32 %v1052, %v1215
    %v1222 = vadd.f32 %v1053, %v1218
    %s1223 = scalar_lea.vmem %s4, 1
    %v1224 = vld [vmem:[%s1223] sm:$0x1]
    %v1225 = vmul.f32 %v1221, %v1221
    %v1226 = vmul.f32 %v1222, %v1222
    %v1227 = vsel %vm89, %v1225, 0.0
    %1228 = vadd.xlane.f32.xlu0 %v1227
    %v1229 = vpop.xlane.xlu0 %1228
    %v1230 = vsel %vm89, %v1226, 0.0
    %1231 = vadd.xlane.f32.xlu0 %v1230
    %v1232 = vpop.xlane.xlu0 %1231
    %v1233 = vmul.f32 %v1229, %v96
    %v1234 = vmul.f32 %v1232, %v96
    %v1235 = vadd.f32 %v1233, 1e-06
    %v1236 = vadd.f32 %v1234, 1e-06
    %v1237 = vrsqrt.pop %v1235
    %v1238 = vrsqrt.pop %v1236
    %v1239 = vmul.f32 %v1221, %v1237
    %v1240 = vmul.f32 %v1222, %v1238
    %v1242 = vlaneseq
    %v1243 = vshrl.u32 %v1242, 7
    %v1244 = vsub.s32 0, %v1243
    %v1245 = vrot.slane %v1224, %v1244
    %v1247 = vmul.f32 %v1239, %v1245
    %v1248 = vmul.f32 %v1240, %v1245
    %v1249 = vpack.c.bf16 %v1248, %v1247
    %s1250 = scalar_lea.vmem [#allocation6], 64
    %v1251 = vld [vmem:[%s1250] sm:$0xf]
    %v1252 = vld [vmem:[%s1250 + $0x4] sm:$0xf]
    %v1253 = vld [vmem:[%s1250 + $0x8] sm:$0xf]
    %v1254 = vld [vmem:[%s1250 + $0xc] sm:$0xf]
    %v1255 = vld [vmem:[%s1250 + $0x10] sm:$0xf]
    %v1256 = vld [vmem:[%s1250 + $0x14] sm:$0xf]
    %v1257 = vld [vmem:[%s1250 + $0x18] sm:$0xf]
    %v1258 = vld [vmem:[%s1250 + $0x1c] sm:$0xf]
    %v1259 = vld [vmem:[%s1250 + $0x20] sm:$0xf]
    %v1260 = vld [vmem:[%s1250 + $0x24] sm:$0xf]
    %v1261 = vld [vmem:[%s1250 + $0x28] sm:$0xf]
    %v1262 = vld [vmem:[%s1250 + $0x2c] sm:$0xf]
    %v1263 = vld [vmem:[%s1250 + $0x30] sm:$0xf]
    %v1264 = vld [vmem:[%s1250 + $0x34] sm:$0xf]
    %v1265 = vld [vmem:[%s1250 + $0x38] sm:$0xf]
    %v1266 = vld [vmem:[%s1250 + $0x3c] sm:$0xf]
    %v1271 = vunpack.c.l.b16 %v1251
    %v1272 = vunpack.c.l.b16 %v1252
    %v1273 = vunpack.c.l.b16 %v1253
    %v1274 = vunpack.c.l.b16 %v1254
    %v1275 = vpack.c.b16 %v1272, %v1271
    %v1276 = vpack.c.b16 %v1274, %v1273
    %v1280 = vsel %vm89, %v1249, 0
    %1282 = vmatprep.subr.bf16.mxu0 0
    %1283 = vmatpush1.bf16.msra.mxu0 %v1275
    %1284 = vmatprep.subr.bf16.mxu0 0
    %1285 = vmatpush1.bf16.msra.mxu0 %v1276
    %1286 = vmatprep.subr.bf16.mxu0 0
    %1287 = vmatpush1.bf16.msra.mxu0 0
    %1288 = vmatprep.subr.bf16.mxu0 0
    %1289 = vmatpush1.bf16.msra.mxu0 0
    %1290 = vmatprep.subr.bf16.mxu0 0
    %1291 = vmatpush1.bf16.msra.mxu0 0
    %1292 = vmatprep.subr.bf16.mxu0 0
    %1293 = vmatpush1.bf16.msra.mxu0 0
    %1294 = vmatprep.subr.bf16.mxu0 0
    %1295 = vmatpush1.bf16.msra.mxu0 0
    %1296 = vmatprep.subr.bf16.mxu0 0
    %1297 = vmatpush1.bf16.msra.mxu0 0
    %1298 = vmatprep.subr.bf16.mxu0 0
    %1299 = vmatpush1.bf16.msra.mxu0 0
    %1300 = vmatprep.subr.bf16.mxu0 0
    %1301 = vmatpush1.bf16.msra.mxu0 0
    %1302 = vmatprep.subr.bf16.mxu0 0
    %1303 = vmatpush1.bf16.msra.mxu0 0
    %1304 = vmatprep.subr.bf16.mxu0 0
    %1305 = vmatpush1.bf16.msra.mxu0 0
    %1306 = vmatprep.subr.bf16.mxu0 0
    %1307 = vmatpush1.bf16.msra.mxu0 0
    %1308 = vmatprep.subr.bf16.mxu0 0
    %1309 = vmatpush1.bf16.msra.mxu0 0
    %1310 = vmatprep.subr.bf16.mxu0 0
    %1311 = vmatpush1.bf16.msra.mxu0 0
    %1312 = vmatprep.subr.bf16.mxu0 0
    %1313 = vmatpush1.bf16.msra.mxu0 0
    %1314 = vmatprep.mubr.bf16.mxu0 0
    %1315 = vmatmul.mubr.bf16.gmra.mrb[0].mxu0 %v1280
    %v1316 = vpop.f32.mrb[0].mxu0
    %v1317 = vadd.f32 0.0, %v1316
    %v1318 = vpop.f32.mrb[0].mxu0
    %v1319 = vpop.f32.mrb[0].mxu0
    %v1320 = vadd.f32 0.0, %v1319
    %v1321 = vpop.f32.mrb[0].mxu0
    %1322 = vdwg.mxu0
    %v1327 = vunpack.c.l.b16 %v1255
    %v1328 = vunpack.c.l.b16 %v1256
    %v1329 = vunpack.c.l.b16 %v1257
    %v1330 = vunpack.c.l.b16 %v1258
    %v1331 = vpack.c.b16 %v1328, %v1327
    %v1332 = vpack.c.b16 %v1330, %v1329
    %1335 = vmatprep.subr.bf16.mxu0 0
    %1336 = vmatpush1.bf16.msra.mxu0 %v1331
    %1337 = vmatprep.subr.bf16.mxu0 0
    %1338 = vmatpush1.bf16.msra.mxu0 %v1332
    %1339 = vmatprep.subr.bf16.mxu0 0
    %1340 = vmatpush1.bf16.msra.mxu0 0
    %1341 = vmatprep.subr.bf16.mxu0 0
    %1342 = vmatpush1.bf16.msra.mxu0 0
    %1343 = vmatprep.subr.bf16.mxu0 0
    %1344 = vmatpush1.bf16.msra.mxu0 0
    %1345 = vmatprep.subr.bf16.mxu0 0
    %1346 = vmatpush1.bf16.msra.mxu0 0
    %1347 = vmatprep.subr.bf16.mxu0 0
    %1348 = vmatpush1.bf16.msra.mxu0 0
    %1349 = vmatprep.subr.bf16.mxu0 0
    %1350 = vmatpush1.bf16.msra.mxu0 0
    %1351 = vmatprep.subr.bf16.mxu0 0
    %1352 = vmatpush1.bf16.msra.mxu0 0
    %1353 = vmatprep.subr.bf16.mxu0 0
    %1354 = vmatpush1.bf16.msra.mxu0 0
    %1355 = vmatprep.subr.bf16.mxu0 0
    %1356 = vmatpush1.bf16.msra.mxu0 0
    %1357 = vmatprep.subr.bf16.mxu0 0
    %1358 = vmatpush1.bf16.msra.mxu0 0
    %1359 = vmatprep.subr.bf16.mxu0 0
    %1360 = vmatpush1.bf16.msra.mxu0 0
    %1361 = vmatprep.subr.bf16.mxu0 0
    %1362 = vmatpush1.bf16.msra.mxu0 0
    %1363 = vmatprep.subr.bf16.mxu0 0
    %1364 = vmatpush1.bf16.msra.mxu0 0
    %1365 = vmatprep.subr.bf16.mxu0 0
    %1366 = vmatpush1.bf16.msra.mxu0 0
    %1367 = vmatprep.mubr.bf16.mxu0 0
    %1368 = vmatmul.mubr.bf16.gmra.mrb[0].mxu0 %v1280
    %v1369 = vpop.f32.mrb[0].mxu0
    %v1370 = vadd.f32 0.0, %v1369
    %v1371 = vpop.f32.mrb[0].mxu0
    %v1372 = vpop.f32.mrb[0].mxu0
    %v1373 = vadd.f32 0.0, %v1372
    %v1374 = vpop.f32.mrb[0].mxu0
    %1375 = vdwg.mxu0
    %v1380 = vunpack.c.l.b16 %v1259
    %v1381 = vunpack.c.l.b16 %v1260
    %v1382 = vunpack.c.l.b16 %v1261
    %v1383 = vunpack.c.l.b16 %v1262
    %v1384 = vpack.c.b16 %v1381, %v1380
    %v1385 = vpack.c.b16 %v1383, %v1382
    %1388 = vmatprep.subr.bf16.mxu0 0
    %1389 = vmatpush1.bf16.msra.mxu0 %v1384
    %1390 = vmatprep.subr.bf16.mxu0 0
    %1391 = vmatpush1.bf16.msra.mxu0 %v1385
    %1392 = vmatprep.subr.bf16.mxu0 0
    %1393 = vmatpush1.bf16.msra.mxu0 0
    %1394 = vmatprep.subr.bf16.mxu0 0
    %1395 = vmatpush1.bf16.msra.mxu0 0
    %1396 = vmatprep.subr.bf16.mxu0 0
    %1397 = vmatpush1.bf16.msra.mxu0 0
    %1398 = vmatprep.subr.bf16.mxu0 0
    %1399 = vmatpush1.bf16.msra.mxu0 0
    %1400 = vmatprep.subr.bf16.mxu0 0
    %1401 = vmatpush1.bf16.msra.mxu0 0
    %1402 = vmatprep.subr.bf16.mxu0 0
    %1403 = vmatpush1.bf16.msra.mxu0 0
    %1404 = vmatprep.subr.bf16.mxu0 0
    %1405 = vmatpush1.bf16.msra.mxu0 0
    %1406 = vmatprep.subr.bf16.mxu0 0
    %1407 = vmatpush1.bf16.msra.mxu0 0
    %1408 = vmatprep.subr.bf16.mxu0 0
    %1409 = vmatpush1.bf16.msra.mxu0 0
    %1410 = vmatprep.subr.bf16.mxu0 0
    %1411 = vmatpush1.bf16.msra.mxu0 0
    %1412 = vmatprep.subr.bf16.mxu0 0
    %1413 = vmatpush1.bf16.msra.mxu0 0
    %1414 = vmatprep.subr.bf16.mxu0 0
    %1415 = vmatpush1.bf16.msra.mxu0 0
    %1416 = vmatprep.subr.bf16.mxu0 0
    %1417 = vmatpush1.bf16.msra.mxu0 0
    %1418 = vmatprep.subr.bf16.mxu0 0
    %1419 = vmatpush1.bf16.msra.mxu0 0
    %1420 = vmatprep.mubr.bf16.mxu0 0
    %1421 = vmatmul.mubr.bf16.gmra.mrb[0].mxu0 %v1280
    %v1422 = vpop.f32.mrb[0].mxu0
    %v1423 = vadd.f32 0.0, %v1422
    %v1424 = vpop.f32.mrb[0].mxu0
    %v1425 = vpop.f32.mrb[0].mxu0
    %v1426 = vadd.f32 0.0, %v1425
    %v1427 = vpop.f32.mrb[0].mxu0
    %1428 = vdwg.mxu0
    %v1433 = vunpack.c.l.b16 %v1263
    %v1434 = vunpack.c.l.b16 %v1264
    %v1435 = vunpack.c.l.b16 %v1265
    %v1436 = vunpack.c.l.b16 %v1266
    %v1437 = vpack.c.b16 %v1434, %v1433
    %v1438 = vpack.c.b16 %v1436, %v1435
    %1441 = vmatprep.subr.bf16.mxu0 0
    %1442 = vmatpush1.bf16.msra.mxu0 %v1437
    %1443 = vmatprep.subr.bf16.mxu0 0
    %1444 = vmatpush1.bf16.msra.mxu0 %v1438
    %1445 = vmatprep.subr.bf16.mxu0 0
    %1446 = vmatpush1.bf16.msra.mxu0 0
    %1447 = vmatprep.subr.bf16.mxu0 0
    %1448 = vmatpush1.bf16.msra.mxu0 0
    %1449 = vmatprep.subr.bf16.mxu0 0
    %1450 = vmatpush1.bf16.msra.mxu0 0
    %1451 = vmatprep.subr.bf16.mxu0 0
    %1452 = vmatpush1.bf16.msra.mxu0 0
    %1453 = vmatprep.subr.bf16.mxu0 0
    %1454 = vmatpush1.bf16.msra.mxu0 0
    %1455 = vmatprep.subr.bf16.mxu0 0
    %1456 = vmatpush1.bf16.msra.mxu0 0
    %1457 = vmatprep.subr.bf16.mxu0 0
    %1458 = vmatpush1.bf16.msra.mxu0 0
    %1459 = vmatprep.subr.bf16.mxu0 0
    %1460 = vmatpush1.bf16.msra.mxu0 0
    %1461 = vmatprep.subr.bf16.mxu0 0
    %1462 = vmatpush1.bf16.msra.mxu0 0
    %1463 = vmatprep.subr.bf16.mxu0 0
    %1464 = vmatpush1.bf16.msra.mxu0 0
    %1465 = vmatprep.subr.bf16.mxu0 0
    %1466 = vmatpush1.bf16.msra.mxu0 0
    %1467 = vmatprep.subr.bf16.mxu0 0
    %1468 = vmatpush1.bf16.msra.mxu0 0
    %1469 = vmatprep.subr.bf16.mxu0 0
    %1470 = vmatpush1.bf16.msra.mxu0 0
    %1471 = vmatprep.subr.bf16.mxu0 0
    %1472 = vmatpush1.bf16.msra.mxu0 0
    %1473 = vmatprep.mubr.bf16.mxu0 0
    %1474 = vmatmul.mubr.bf16.gmra.mrb[0].mxu0 %v1280
    %v1475 = vpop.f32.mrb[0].mxu0
    %v1476 = vadd.f32 0.0, %v1475
    %v1477 = vpop.f32.mrb[0].mxu0
    %v1478 = vpop.f32.mrb[0].mxu0
    %v1479 = vadd.f32 0.0, %v1478
    %v1480 = vpop.f32.mrb[0].mxu0
    %1481 = vdwg.mxu0
    %v1482 = vpack.c.bf16 %v1320, %v1317
    %v1483 = vpack.c.bf16 %v1373, %v1370
    %v1484 = vpack.c.bf16 %v1426, %v1423
    %v1485 = vpack.c.bf16 %v1479, %v1476
    %v1487 = vsel %vm89, %v1482, 0
    %1489 = vmatprep.subr.bf16.mxu0 0
    %1490 = vmatpush1.bf16.xpose.msra.mxu0 %v1280
    %1491 = vmatprep.subr.bf16.mxu0 0
    %1492 = vmatpush1.bf16.xpose.msra.mxu0 0
    %1493 = vmatprep.subr.bf16.mxu0 0
    %1494 = vmatpush1.bf16.xpose.msra.mxu0 0
    %1495 = vmatprep.subr.bf16.mxu0 0
    %1496 = vmatpush1.bf16.xpose.msra.mxu0 0
    %1497 = vmatprep.subr.bf16.mxu0 0
    %1498 = vmatpush1.bf16.xpose.msra.mxu0 0
    %1499 = vmatprep.subr.bf16.mxu0 0
    %1500 = vmatpush1.bf16.xpose.msra.mxu0 0
    %1501 = vmatprep.subr.bf16.mxu0 0
    %1502 = vmatpush1.bf16.xpose.msra.mxu0 0
    %1503 = vmatprep.subr.bf16.mxu0 0
    %1504 = vmatpush1.bf16.xpose.msra.mxu0 0
    %1505 = vmatprep.subr.bf16.mxu0 0
    %1506 = vmatpush1.bf16.xpose.msra.mxu0 0
    %1507 = vmatprep.subr.bf16.mxu0 0
    %1508 = vmatpush1.bf16.xpose.msra.mxu0 0
    %1509 = vmatprep.subr.bf16.mxu0 0
    %1510 = vmatpush1.bf16.xpose.msra.mxu0 0
    %1511 = vmatprep.subr.bf16.mxu0 0
    %1512 = vmatpush1.bf16.xpose.msra.mxu0 0
    %1513 = vmatprep.subr.bf16.mxu0 0
    %1514 = vmatpush1.bf16.xpose.msra.mxu0 0
    %1515 = vmatprep.subr.bf16.mxu0 0
    %1516 = vmatpush1.bf16.xpose.msra.mxu0 0
    %1517 = vmatprep.subr.bf16.mxu0 0
    %1518 = vmatpush1.bf16.xpose.msra.mxu0 0
    %1519 = vmatprep.subr.bf16.mxu0 0
    %1520 = vmatpush1.bf16.xpose.msra.mxu0 0
    %1521 = vmatprep.mubr.bf16.mxu0 0
    %1522 = vmatmul.mubr.bf16.gmra.mrb[0].mxu0 %v1487
    %v1523 = vpop.f32.mrb[0].mxu0
    %v1524 = vadd.f32 %v78, %v1523
    %v1525 = vpop.f32.mrb[0].mxu0
    %v1526 = vpop.f32.mrb[0].mxu0
    %v1527 = vadd.f32 %v79, %v1526
    %v1528 = vpop.f32.mrb[0].mxu0
    %1529 = vdwg.mxu0
    %v1531 = vsel %vm89, %v1483, 0
    %1533 = vmatprep.subr.bf16.mxu0 0
    %1534 = vmatpush1.bf16.xpose.msra.mxu0 %v1280
    %1535 = vmatprep.subr.bf16.mxu0 0
    %1536 = vmatpush1.bf16.xpose.msra.mxu0 0
    %1537 = vmatprep.subr.bf16.mxu0 0
    %1538 = vmatpush1.bf16.xpose.msra.mxu0 0
    %1539 = vmatprep.subr.bf16.mxu0 0
    %1540 = vmatpush1.bf16.xpose.msra.mxu0 0
    %1541 = vmatprep.subr.bf16.mxu0 0
    %1542 = vmatpush1.bf16.xpose.msra.mxu0 0
    %1543 = vmatprep.subr.bf16.mxu0 0
    %1544 = vmatpush1.bf16.xpose.msra.mxu0 0
    %1545 = vmatprep.subr.bf16.mxu0 0
    %1546 = vmatpush1.bf16.xpose.msra.mxu0 0
    %1547 = vmatprep.subr.bf16.mxu0 0
    %1548 = vmatpush1.bf16.xpose.msra.mxu0 0
    %1549 = vmatprep.subr.bf16.mxu0 0
    %1550 = vmatpush1.bf16.xpose.msra.mxu0 0
    %1551 = vmatprep.subr.bf16.mxu0 0
    %1552 = vmatpush1.bf16.xpose.msra.mxu0 0
    %1553 = vmatprep.subr.bf16.mxu0 0
    %1554 = vmatpush1.bf16.xpose.msra.mxu0 0
    %1555 = vmatprep.subr.bf16.mxu0 0
    %1556 = vmatpush1.bf16.xpose.msra.mxu0 0
    %1557 = vmatprep.subr.bf16.mxu0 0
    %1558 = vmatpush1.bf16.xpose.msra.mxu0 0
    %1559 = vmatprep.subr.bf16.mxu0 0
    %1560 = vmatpush1.bf16.xpose.msra.mxu0 0
    %1561 = vmatprep.subr.bf16.mxu0 0
    %1562 = vmatpush1.bf16.xpose.msra.mxu0 0
    %1563 = vmatprep.subr.bf16.mxu0 0
    %1564 = vmatpush1.bf16.xpose.msra.mxu0 0
    %1565 = vmatprep.mubr.bf16.mxu0 0
    %1566 = vmatmul.mubr.bf16.gmra.mrb[0].mxu0 %v1531
    %v1567 = vpop.f32.mrb[0].mxu0
    %v1568 = vadd.f32 %v80, %v1567
    %v1569 = vpop.f32.mrb[0].mxu0
    %v1570 = vpop.f32.mrb[0].mxu0
    %v1571 = vadd.f32 %v81, %v1570
    %v1572 = vpop.f32.mrb[0].mxu0
    %1573 = vdwg.mxu0
    %v1575 = vsel %vm89, %v1484, 0
    %1577 = vmatprep.subr.bf16.mxu0 0
    %1578 = vmatpush1.bf16.xpose.msra.mxu0 %v1280
    %1579 = vmatprep.subr.bf16.mxu0 0
    %1580 = vmatpush1.bf16.xpose.msra.mxu0 0
    %1581 = vmatprep.subr.bf16.mxu0 0
    %1582 = vmatpush1.bf16.xpose.msra.mxu0 0
    %1583 = vmatprep.subr.bf16.mxu0 0
    %1584 = vmatpush1.bf16.xpose.msra.mxu0 0
    %1585 = vmatprep.subr.bf16.mxu0 0
    %1586 = vmatpush1.bf16.xpose.msra.mxu0 0
    %1587 = vmatprep.subr.bf16.mxu0 0
    %1588 = vmatpush1.bf16.xpose.msra.mxu0 0
    %1589 = vmatprep.subr.bf16.mxu0 0
    %1590 = vmatpush1.bf16.xpose.msra.mxu0 0
    %1591 = vmatprep.subr.bf16.mxu0 0
    %1592 = vmatpush1.bf16.xpose.msra.mxu0 0
    %1593 = vmatprep.subr.bf16.mxu0 0
    %1594 = vmatpush1.bf16.xpose.msra.mxu0 0
    %1595 = vmatprep.subr.bf16.mxu0 0
    %1596 = vmatpush1.bf16.xpose.msra.mxu0 0
    %1597 = vmatprep.subr.bf16.mxu0 0
    %1598 = vmatpush1.bf16.xpose.msra.mxu0 0
    %1599 = vmatprep.subr.bf16.mxu0 0
    %1600 = vmatpush1.bf16.xpose.msra.mxu0 0
    %1601 = vmatprep.subr.bf16.mxu0 0
    %1602 = vmatpush1.bf16.xpose.msra.mxu0 0
    %1603 = vmatprep.subr.bf16.mxu0 0
    %1604 = vmatpush1.bf16.xpose.msra.mxu0 0
    %1605 = vmatprep.subr.bf16.mxu0 0
    %1606 = vmatpush1.bf16.xpose.msra.mxu0 0
    %1607 = vmatprep.subr.bf16.mxu0 0
    %1608 = vmatpush1.bf16.xpose.msra.mxu0 0
    %1609 = vmatprep.mubr.bf16.mxu0 0
    %1610 = vmatmul.mubr.bf16.gmra.mrb[0].mxu0 %v1575
    %v1611 = vpop.f32.mrb[0].mxu0
    %v1612 = vadd.f32 %v82, %v1611
    %v1613 = vpop.f32.mrb[0].mxu0
    %v1614 = vpop.f32.mrb[0].mxu0
    %v1615 = vadd.f32 %v83, %v1614
    %v1616 = vpop.f32.mrb[0].mxu0
    %1617 = vdwg.mxu0
    %v1619 = vsel %vm89, %v1485, 0
    %1621 = vmatprep.subr.bf16.mxu0 0
    %1622 = vmatpush1.bf16.xpose.msra.mxu0 %v1280
    %1623 = vmatprep.subr.bf16.mxu0 0
    %1624 = vmatpush1.bf16.xpose.msra.mxu0 0
    %1625 = vmatprep.subr.bf16.mxu0 0
    %1626 = vmatpush1.bf16.xpose.msra.mxu0 0
    %1627 = vmatprep.subr.bf16.mxu0 0
    %1628 = vmatpush1.bf16.xpose.msra.mxu0 0
    %1629 = vmatprep.subr.bf16.mxu0 0
    %1630 = vmatpush1.bf16.xpose.msra.mxu0 0
    %1631 = vmatprep.subr.bf16.mxu0 0
    %1632 = vmatpush1.bf16.xpose.msra.mxu0 0
    %1633 = vmatprep.subr.bf16.mxu0 0
    %1634 = vmatpush1.bf16.xpose.msra.mxu0 0
    %1635 = vmatprep.subr.bf16.mxu0 0
    %1636 = vmatpush1.bf16.xpose.msra.mxu0 0
    %1637 = vmatprep.subr.bf16.mxu0 0
    %1638 = vmatpush1.bf16.xpose.msra.mxu0 0
    %1639 = vmatprep.subr.bf16.mxu0 0
    %1640 = vmatpush1.bf16.xpose.msra.mxu0 0
    %1641 = vmatprep.subr.bf16.mxu0 0
    %1642 = vmatpush1.bf16.xpose.msra.mxu0 0
    %1643 = vmatprep.subr.bf16.mxu0 0
    %1644 = vmatpush1.bf16.xpose.msra.mxu0 0
    %1645 = vmatprep.subr.bf16.mxu0 0
    %1646 = vmatpush1.bf16.xpose.msra.mxu0 0
    %1647 = vmatprep.subr.bf16.mxu0 0
    %1648 = vmatpush1.bf16.xpose.msra.mxu0 0
    %1649 = vmatprep.subr.bf16.mxu0 0
    %1650 = vmatpush1.bf16.xpose.msra.mxu0 0
    %1651 = vmatprep.subr.bf16.mxu0 0
    %1652 = vmatpush1.bf16.xpose.msra.mxu0 0
    %1653 = vmatprep.mubr.bf16.mxu0 0
    %1654 = vmatmul.mubr.bf16.gmra.mrb[0].mxu0 %v1619
    %v1655 = vpop.f32.mrb[0].mxu0
    %v1656 = vadd.f32 %v84, %v1655
    %v1657 = vpop.f32.mrb[0].mxu0
    %v1658 = vpop.f32.mrb[0].mxu0
    %v1659 = vadd.f32 %v85, %v1658
    %v1660 = vpop.f32.mrb[0].mxu0
    %1661 = vdwg.mxu0
    %v1662 = vsel %vm525, %v1524, -inf
    %1663 = vmax.xlane.f32.xlu0 %v1662
    %v1664 = vpop.xlane.xlu0 %1663
    %v1665 = vsel %vm525, %v1527, -inf
    %1666 = vmax.xlane.f32.xlu0 %v1665
    %v1667 = vpop.xlane.xlu0 %1666
    %v1668 = vsel %vm525, %v1568, -inf
    %1669 = vmax.xlane.f32.xlu0 %v1668
    %v1670 = vpop.xlane.xlu0 %1669
    %v1671 = vsel %vm525, %v1571, -inf
    %1672 = vmax.xlane.f32.xlu0 %v1671
    %v1673 = vpop.xlane.xlu0 %1672
    %v1674 = vsel %vm525, %v1612, -inf
    %1675 = vmax.xlane.f32.xlu0 %v1674
    %v1676 = vpop.xlane.xlu0 %1675
    %v1677 = vsel %vm525, %v1615, -inf
    %1678 = vmax.xlane.f32.xlu0 %v1677
    %v1679 = vpop.xlane.xlu0 %1678
    %v1680 = vsel %vm525, %v1656, -inf
    %1681 = vmax.xlane.f32.xlu0 %v1680
    %v1682 = vpop.xlane.xlu0 %1681
    %v1683 = vsel %vm525, %v1659, -inf
    %1684 = vmax.xlane.f32.xlu0 %v1683
    %v1685 = vpop.xlane.xlu0 %1684
    %v1686 = vsub.f32 %v1524, %v1664
    %v1687 = vsub.f32 %v1527, %v1667
    %v1688 = vsub.f32 %v1568, %v1670
    %v1689 = vsub.f32 %v1571, %v1673
    %v1690 = vsub.f32 %v1612, %v1676
    %v1691 = vsub.f32 %v1615, %v1679
    %v1692 = vsub.f32 %v1656, %v1682
    %v1693 = vsub.f32 %v1659, %v1685
    %v1694 = vmul.f32 %v1686, 1.442695
    %v1695 = vpow.pop %v1694
    %v1696 = vmul.f32 %v1687, 1.442695
    %v1697 = vpow.pop %v1696
    %v1698 = vmul.f32 %v1688, 1.442695
    %v1699 = vpow.pop %v1698
    %v1700 = vmul.f32 %v1689, 1.442695
    %v1701 = vpow.pop %v1700
    %v1702 = vmul.f32 %v1690, 1.442695
    %v1703 = vpow.pop %v1702
    %v1704 = vmul.f32 %v1691, 1.442695
    %v1705 = vpow.pop %v1704
    %v1706 = vmul.f32 %v1692, 1.442695
    %v1707 = vpow.pop %v1706
    %v1708 = vmul.f32 %v1693, 1.442695
    %v1709 = vpow.pop %v1708
    %v1710 = vsel %vm525, %v1695, 0.0
    %1711 = vadd.xlane.f32.xlu0 %v1710
    %v1712 = vpop.xlane.xlu0 %1711
    %v1713 = vsel %vm525, %v1697, 0.0
    %1714 = vadd.xlane.f32.xlu0 %v1713
    %v1715 = vpop.xlane.xlu0 %1714
    %v1716 = vsel %vm525, %v1699, 0.0
    %1717 = vadd.xlane.f32.xlu0 %v1716
    %v1718 = vpop.xlane.xlu0 %1717
    %v1719 = vsel %vm525, %v1701, 0.0
    %1720 = vadd.xlane.f32.xlu0 %v1719
    %v1721 = vpop.xlane.xlu0 %1720
    %v1722 = vsel %vm525, %v1703, 0.0
    %1723 = vadd.xlane.f32.xlu0 %v1722
    %v1724 = vpop.xlane.xlu0 %1723
    %v1725 = vsel %vm525, %v1705, 0.0
    %1726 = vadd.xlane.f32.xlu0 %v1725
    %v1727 = vpop.xlane.xlu0 %1726
    %v1728 = vsel %vm525, %v1707, 0.0
    %1729 = vadd.xlane.f32.xlu0 %v1728
    %v1730 = vpop.xlane.xlu0 %1729
    %v1731 = vsel %vm525, %v1709, 0.0
    %1732 = vadd.xlane.f32.xlu0 %v1731
    %v1733 = vpop.xlane.xlu0 %1732
    %v1734 = vrcp.pop %v1712
    %v1735 = vrcp.pop %v1715
    %v1736 = vrcp.pop %v1718
    %v1737 = vrcp.pop %v1721
    %v1738 = vrcp.pop %v1724
    %v1739 = vrcp.pop %v1727
    %v1740 = vrcp.pop %v1730
    %v1741 = vrcp.pop %v1733
    %v1742 = vmul.f32 %v1695, %v1734
    %v1743 = vmul.f32 %v1697, %v1735
    %v1744 = vmul.f32 %v1699, %v1736
    %v1745 = vmul.f32 %v1701, %v1737
    %v1746 = vmul.f32 %v1703, %v1738
    %v1747 = vmul.f32 %v1705, %v1739
    %v1748 = vmul.f32 %v1707, %v1740
    %v1749 = vmul.f32 %v1709, %v1741
    %v1750 = vpack.c.bf16 %v1743, %v1742
    %v1751 = vpack.c.bf16 %v1745, %v1744
    %v1752 = vpack.c.bf16 %v1747, %v1746
    %v1753 = vpack.c.bf16 %v1749, %v1748
    %v1755 = vsel %vm525, %v1750, 0
    %1757 = vmatprep.subr.bf16.mxu0 0
    %1758 = vmatpush1.bf16.msra.mxu0 %v1249
    %1759 = vmatprep.subr.bf16.mxu0 0
    %1760 = vmatpush1.bf16.msra.mxu0 0
    %1761 = vmatprep.subr.bf16.mxu0 0
    %1762 = vmatpush1.bf16.msra.mxu0 0
    %1763 = vmatprep.subr.bf16.mxu0 0
    %1764 = vmatpush1.bf16.msra.mxu0 0
    %1765 = vmatprep.subr.bf16.mxu0 0
    %1766 = vmatpush1.bf16.msra.mxu0 0
    %1767 = vmatprep.subr.bf16.mxu0 0
    %1768 = vmatpush1.bf16.msra.mxu0 0
    %1769 = vmatprep.subr.bf16.mxu0 0
    %1770 = vmatpush1.bf16.msra.mxu0 0
    %1771 = vmatprep.subr.bf16.mxu0 0
    %1772 = vmatpush1.bf16.msra.mxu0 0
    %1773 = vmatprep.subr.bf16.mxu0 0
    %1774 = vmatpush1.bf16.msra.mxu0 0
    %1775 = vmatprep.subr.bf16.mxu0 0
    %1776 = vmatpush1.bf16.msra.mxu0 0
    %1777 = vmatprep.subr.bf16.mxu0 0
    %1778 = vmatpush1.bf16.msra.mxu0 0
    %1779 = vmatprep.subr.bf16.mxu0 0
    %1780 = vmatpush1.bf16.msra.mxu0 0
    %1781 = vmatprep.subr.bf16.mxu0 0
    %1782 = vmatpush1.bf16.msra.mxu0 0
    %1783 = vmatprep.subr.bf16.mxu0 0
    %1784 = vmatpush1.bf16.msra.mxu0 0
    %1785 = vmatprep.subr.bf16.mxu0 0
    %1786 = vmatpush1.bf16.msra.mxu0 0
    %1787 = vmatprep.subr.bf16.mxu0 0
    %1788 = vmatpush1.bf16.msra.mxu0 0
    %1789 = vmatprep.mubr.bf16.mxu0 0
    %1790 = vmatmul.mubr.bf16.gmra.mrb[0].mxu0 %v1755
    %v1791 = vpop.f32.mrb[0].mxu0
    %v1792 = vadd.f32 0.0, %v1791
    %v1793 = vpop.f32.mrb[0].mxu0
    %v1794 = vpop.f32.mrb[0].mxu0
    %v1795 = vadd.f32 0.0, %v1794
    %v1796 = vpop.f32.mrb[0].mxu0
    %1797 = vdwg.mxu0
    %v1799 = vsel %vm525, %v1751, 0
    %1801 = vmatprep.subr.bf16.mxu0 0
    %1802 = vmatpush1.bf16.msra.mxu0 %v1249
    %1803 = vmatprep.subr.bf16.mxu0 0
    %1804 = vmatpush1.bf16.msra.mxu0 0
    %1805 = vmatprep.subr.bf16.mxu0 0
    %1806 = vmatpush1.bf16.msra.mxu0 0
    %1807 = vmatprep.subr.bf16.mxu0 0
    %1808 = vmatpush1.bf16.msra.mxu0 0
    %1809 = vmatprep.subr.bf16.mxu0 0
    %1810 = vmatpush1.bf16.msra.mxu0 0
    %1811 = vmatprep.subr.bf16.mxu0 0
    %1812 = vmatpush1.bf16.msra.mxu0 0
    %1813 = vmatprep.subr.bf16.mxu0 0
    %1814 = vmatpush1.bf16.msra.mxu0 0
    %1815 = vmatprep.subr.bf16.mxu0 0
    %1816 = vmatpush1.bf16.msra.mxu0 0
    %1817 = vmatprep.subr.bf16.mxu0 0
    %1818 = vmatpush1.bf16.msra.mxu0 0
    %1819 = vmatprep.subr.bf16.mxu0 0
    %1820 = vmatpush1.bf16.msra.mxu0 0
    %1821 = vmatprep.subr.bf16.mxu0 0
    %1822 = vmatpush1.bf16.msra.mxu0 0
    %1823 = vmatprep.subr.bf16.mxu0 0
    %1824 = vmatpush1.bf16.msra.mxu0 0
    %1825 = vmatprep.subr.bf16.mxu0 0
    %1826 = vmatpush1.bf16.msra.mxu0 0
    %1827 = vmatprep.subr.bf16.mxu0 0
    %1828 = vmatpush1.bf16.msra.mxu0 0
    %1829 = vmatprep.subr.bf16.mxu0 0
    %1830 = vmatpush1.bf16.msra.mxu0 0
    %1831 = vmatprep.subr.bf16.mxu0 0
    %1832 = vmatpush1.bf16.msra.mxu0 0
    %1833 = vmatprep.mubr.bf16.mxu0 0
    %1834 = vmatmul.mubr.bf16.gmra.mrb[0].mxu0 %v1799
    %v1835 = vpop.f32.mrb[0].mxu0
    %v1836 = vadd.f32 0.0, %v1835
    %v1837 = vpop.f32.mrb[0].mxu0
    %v1838 = vpop.f32.mrb[0].mxu0
    %v1839 = vadd.f32 0.0, %v1838
    %v1840 = vpop.f32.mrb[0].mxu0
    %1841 = vdwg.mxu0
    %v1843 = vsel %vm525, %v1752, 0
    %1845 = vmatprep.subr.bf16.mxu0 0
    %1846 = vmatpush1.bf16.msra.mxu0 %v1249
    %1847 = vmatprep.subr.bf16.mxu0 0
    %1848 = vmatpush1.bf16.msra.mxu0 0
    %1849 = vmatprep.subr.bf16.mxu0 0
    %1850 = vmatpush1.bf16.msra.mxu0 0
    %1851 = vmatprep.subr.bf16.mxu0 0
    %1852 = vmatpush1.bf16.msra.mxu0 0
    %1853 = vmatprep.subr.bf16.mxu0 0
    %1854 = vmatpush1.bf16.msra.mxu0 0
    %1855 = vmatprep.subr.bf16.mxu0 0
    %1856 = vmatpush1.bf16.msra.mxu0 0
    %1857 = vmatprep.subr.bf16.mxu0 0
    %1858 = vmatpush1.bf16.msra.mxu0 0
    %1859 = vmatprep.subr.bf16.mxu0 0
    %1860 = vmatpush1.bf16.msra.mxu0 0
    %1861 = vmatprep.subr.bf16.mxu0 0
    %1862 = vmatpush1.bf16.msra.mxu0 0
    %1863 = vmatprep.subr.bf16.mxu0 0
    %1864 = vmatpush1.bf16.msra.mxu0 0
    %1865 = vmatprep.subr.bf16.mxu0 0
    %1866 = vmatpush1.bf16.msra.mxu0 0
    %1867 = vmatprep.subr.bf16.mxu0 0
    %1868 = vmatpush1.bf16.msra.mxu0 0
    %1869 = vmatprep.subr.bf16.mxu0 0
    %1870 = vmatpush1.bf16.msra.mxu0 0
    %1871 = vmatprep.subr.bf16.mxu0 0
    %1872 = vmatpush1.bf16.msra.mxu0 0
    %1873 = vmatprep.subr.bf16.mxu0 0
    %1874 = vmatpush1.bf16.msra.mxu0 0
    %1875 = vmatprep.subr.bf16.mxu0 0
    %1876 = vmatpush1.bf16.msra.mxu0 0
    %1877 = vmatprep.mubr.bf16.mxu0 0
    %1878 = vmatmul.mubr.bf16.gmra.mrb[0].mxu0 %v1843
    %v1879 = vpop.f32.mrb[0].mxu0
    %v1880 = vadd.f32 0.0, %v1879
    %v1881 = vpop.f32.mrb[0].mxu0
    %v1882 = vpop.f32.mrb[0].mxu0
    %v1883 = vadd.f32 0.0, %v1882
    %v1884 = vpop.f32.mrb[0].mxu0
    %1885 = vdwg.mxu0
    %v1887 = vsel %vm525, %v1753, 0
    %1889 = vmatprep.subr.bf16.mxu0 0
    %1890 = vmatpush1.bf16.msra.mxu0 %v1249
    %1891 = vmatprep.subr.bf16.mxu0 0
    %1892 = vmatpush1.bf16.msra.mxu0 0
    %1893 = vmatprep.subr.bf16.mxu0 0
    %1894 = vmatpush1.bf16.msra.mxu0 0
    %1895 = vmatprep.subr.bf16.mxu0 0
    %1896 = vmatpush1.bf16.msra.mxu0 0
    %1897 = vmatprep.subr.bf16.mxu0 0
    %1898 = vmatpush1.bf16.msra.mxu0 0
    %1899 = vmatprep.subr.bf16.mxu0 0
    %1900 = vmatpush1.bf16.msra.mxu0 0
    %1901 = vmatprep.subr.bf16.mxu0 0
    %1902 = vmatpush1.bf16.msra.mxu0 0
    %1903 = vmatprep.subr.bf16.mxu0 0
    %1904 = vmatpush1.bf16.msra.mxu0 0
    %1905 = vmatprep.subr.bf16.mxu0 0
    %1906 = vmatpush1.bf16.msra.mxu0 0
    %1907 = vmatprep.subr.bf16.mxu0 0
    %1908 = vmatpush1.bf16.msra.mxu0 0
    %1909 = vmatprep.subr.bf16.mxu0 0
    %1910 = vmatpush1.bf16.msra.mxu0 0
    %1911 = vmatprep.subr.bf16.mxu0 0
    %1912 = vmatpush1.bf16.msra.mxu0 0
    %1913 = vmatprep.subr.bf16.mxu0 0
    %1914 = vmatpush1.bf16.msra.mxu0 0
    %1915 = vmatprep.subr.bf16.mxu0 0
    %1916 = vmatpush1.bf16.msra.mxu0 0
    %1917 = vmatprep.subr.bf16.mxu0 0
    %1918 = vmatpush1.bf16.msra.mxu0 0
    %1919 = vmatprep.subr.bf16.mxu0 0
    %1920 = vmatpush1.bf16.msra.mxu0 0
    %1921 = vmatprep.mubr.bf16.mxu0 0
    %1922 = vmatmul.mubr.bf16.gmra.mrb[0].mxu0 %v1887
    %v1923 = vpop.f32.mrb[0].mxu0
    %v1924 = vadd.f32 0.0, %v1923
    %v1925 = vpop.f32.mrb[0].mxu0
    %v1926 = vpop.f32.mrb[0].mxu0
    %v1927 = vadd.f32 0.0, %v1926
    %v1928 = vpop.f32.mrb[0].mxu0
    %1929 = vdwg.mxu0
    %v1930 = vpack.c.bf16 %v1795, %v1792
    %v1931 = vpack.c.bf16 %v1839, %v1836
    %v1932 = vpack.c.bf16 %v1883, %v1880
    %v1933 = vpack.c.bf16 %v1927, %v1924
    %s1934 = scalar_lea.vmem [#allocation8], 64
    %v1935 = vld [vmem:[%s1934] sm:$0xf]
    %v1936 = vld [vmem:[%s1934 + $0x4] sm:$0xf]
    %v1937 = vld [vmem:[%s1934 + $0x8] sm:$0xf]
    %v1938 = vld [vmem:[%s1934 + $0xc] sm:$0xf]
    %v1939 = vld [vmem:[%s1934 + $0x10] sm:$0xf]
    %v1940 = vld [vmem:[%s1934 + $0x14] sm:$0xf]
    %v1941 = vld [vmem:[%s1934 + $0x18] sm:$0xf]
    %v1942 = vld [vmem:[%s1934 + $0x1c] sm:$0xf]
    %v1943 = vld [vmem:[%s1934 + $0x20] sm:$0xf]
    %v1944 = vld [vmem:[%s1934 + $0x24] sm:$0xf]
    %v1945 = vld [vmem:[%s1934 + $0x28] sm:$0xf]
    %v1946 = vld [vmem:[%s1934 + $0x2c] sm:$0xf]
    %v1947 = vld [vmem:[%s1934 + $0x30] sm:$0xf]
    %v1948 = vld [vmem:[%s1934 + $0x34] sm:$0xf]
    %v1949 = vld [vmem:[%s1934 + $0x38] sm:$0xf]
    %v1950 = vld [vmem:[%s1934 + $0x3c] sm:$0xf]
    %v1955 = vunpack.c.l.b16 %v1935
    %v1956 = vunpack.c.l.b16 %v1936
    %v1957 = vunpack.c.l.b16 %v1937
    %v1958 = vunpack.c.l.b16 %v1938
    %v1959 = vpack.c.b16 %v1956, %v1955
    %v1960 = vpack.c.b16 %v1958, %v1957
    %v1964 = vsel %vm89, %v1930, 0
    %1966 = vmatprep.subr.bf16.mxu0 0
    %1967 = vmatpush1.bf16.msra.mxu0 %v1959
    %1968 = vmatprep.subr.bf16.mxu0 0
    %1969 = vmatpush1.bf16.msra.mxu0 %v1960
    %1970 = vmatprep.subr.bf16.mxu0 0
    %1971 = vmatpush1.bf16.msra.mxu0 0
    %1972 = vmatprep.subr.bf16.mxu0 0
    %1973 = vmatpush1.bf16.msra.mxu0 0
    %1974 = vmatprep.subr.bf16.mxu0 0
    %1975 = vmatpush1.bf16.msra.mxu0 0
    %1976 = vmatprep.subr.bf16.mxu0 0
    %1977 = vmatpush1.bf16.msra.mxu0 0
    %1978 = vmatprep.subr.bf16.mxu0 0
    %1979 = vmatpush1.bf16.msra.mxu0 0
    %1980 = vmatprep.subr.bf16.mxu0 0
    %1981 = vmatpush1.bf16.msra.mxu0 0
    %1982 = vmatprep.subr.bf16.mxu0 0
    %1983 = vmatpush1.bf16.msra.mxu0 0
    %1984 = vmatprep.subr.bf16.mxu0 0
    %1985 = vmatpush1.bf16.msra.mxu0 0
    %1986 = vmatprep.subr.bf16.mxu0 0
    %1987 = vmatpush1.bf16.msra.mxu0 0
    %1988 = vmatprep.subr.bf16.mxu0 0
    %1989 = vmatpush1.bf16.msra.mxu0 0
    %1990 = vmatprep.subr.bf16.mxu0 0
    %1991 = vmatpush1.bf16.msra.mxu0 0
    %1992 = vmatprep.subr.bf16.mxu0 0
    %1993 = vmatpush1.bf16.msra.mxu0 0
    %1994 = vmatprep.subr.bf16.mxu0 0
    %1995 = vmatpush1.bf16.msra.mxu0 0
    %1996 = vmatprep.subr.bf16.mxu0 0
    %1997 = vmatpush1.bf16.msra.mxu0 0
    %1998 = vmatprep.mubr.bf16.mxu0 0
    %1999 = vmatmul.mubr.bf16.gmra.mrb[0].mxu0 %v1964
    %v2000 = vpop.f32.mrb[0].mxu0
    %v2001 = vadd.f32 0.0, %v2000
    %v2002 = vpop.f32.mrb[0].mxu0
    %v2003 = vpop.f32.mrb[0].mxu0
    %v2004 = vadd.f32 0.0, %v2003
    %v2005 = vpop.f32.mrb[0].mxu0
    %2006 = vdwg.mxu0
    %v2011 = vunpack.c.l.b16 %v1939
    %v2012 = vunpack.c.l.b16 %v1940
    %v2013 = vunpack.c.l.b16 %v1941
    %v2014 = vunpack.c.l.b16 %v1942
    %v2015 = vpack.c.b16 %v2012, %v2011
    %v2016 = vpack.c.b16 %v2014, %v2013
    %v2020 = vsel %vm89, %v1931, 0
    %2022 = vmatprep.subr.bf16.mxu0 0
    %2023 = vmatpush1.bf16.msra.mxu0 %v2015
    %2024 = vmatprep.subr.bf16.mxu0 0
    %2025 = vmatpush1.bf16.msra.mxu0 %v2016
    %2026 = vmatprep.subr.bf16.mxu0 0
    %2027 = vmatpush1.bf16.msra.mxu0 0
    %2028 = vmatprep.subr.bf16.mxu0 0
    %2029 = vmatpush1.bf16.msra.mxu0 0
    %2030 = vmatprep.subr.bf16.mxu0 0
    %2031 = vmatpush1.bf16.msra.mxu0 0
    %2032 = vmatprep.subr.bf16.mxu0 0
    %2033 = vmatpush1.bf16.msra.mxu0 0
    %2034 = vmatprep.subr.bf16.mxu0 0
    %2035 = vmatpush1.bf16.msra.mxu0 0
    %2036 = vmatprep.subr.bf16.mxu0 0
    %2037 = vmatpush1.bf16.msra.mxu0 0
    %2038 = vmatprep.subr.bf16.mxu0 0
    %2039 = vmatpush1.bf16.msra.mxu0 0
    %2040 = vmatprep.subr.bf16.mxu0 0
    %2041 = vmatpush1.bf16.msra.mxu0 0
    %2042 = vmatprep.subr.bf16.mxu0 0
    %2043 = vmatpush1.bf16.msra.mxu0 0
    %2044 = vmatprep.subr.bf16.mxu0 0
    %2045 = vmatpush1.bf16.msra.mxu0 0
    %2046 = vmatprep.subr.bf16.mxu0 0
    %2047 = vmatpush1.bf16.msra.mxu0 0
    %2048 = vmatprep.subr.bf16.mxu0 0
    %2049 = vmatpush1.bf16.msra.mxu0 0
    %2050 = vmatprep.subr.bf16.mxu0 0
    %2051 = vmatpush1.bf16.msra.mxu0 0
    %2052 = vmatprep.subr.bf16.mxu0 0
    %2053 = vmatpush1.bf16.msra.mxu0 0
    %2054 = vmatprep.mubr.bf16.mxu0 0
    %2055 = vmatmul.mubr.bf16.gmra.mrb[0].mxu0 %v2020
    %v2056 = vpop.f32.mrb[0].mxu0
    %v2057 = vadd.f32 0.0, %v2056
    %v2058 = vpop.f32.mrb[0].mxu0
    %v2059 = vpop.f32.mrb[0].mxu0
    %v2060 = vadd.f32 0.0, %v2059
    %v2061 = vpop.f32.mrb[0].mxu0
    %2062 = vdwg.mxu0
    %v2067 = vunpack.c.l.b16 %v1943
    %v2068 = vunpack.c.l.b16 %v1944
    %v2069 = vunpack.c.l.b16 %v1945
    %v2070 = vunpack.c.l.b16 %v1946
    %v2071 = vpack.c.b16 %v2068, %v2067
    %v2072 = vpack.c.b16 %v2070, %v2069
    %v2076 = vsel %vm89, %v1932, 0
    %2078 = vmatprep.subr.bf16.mxu0 0
    %2079 = vmatpush1.bf16.msra.mxu0 %v2071
    %2080 = vmatprep.subr.bf16.mxu0 0
    %2081 = vmatpush1.bf16.msra.mxu0 %v2072
    %2082 = vmatprep.subr.bf16.mxu0 0
    %2083 = vmatpush1.bf16.msra.mxu0 0
    %2084 = vmatprep.subr.bf16.mxu0 0
    %2085 = vmatpush1.bf16.msra.mxu0 0
    %2086 = vmatprep.subr.bf16.mxu0 0
    %2087 = vmatpush1.bf16.msra.mxu0 0
    %2088 = vmatprep.subr.bf16.mxu0 0
    %2089 = vmatpush1.bf16.msra.mxu0 0
    %2090 = vmatprep.subr.bf16.mxu0 0
    %2091 = vmatpush1.bf16.msra.mxu0 0
    %2092 = vmatprep.subr.bf16.mxu0 0
    %2093 = vmatpush1.bf16.msra.mxu0 0
    %2094 = vmatprep.subr.bf16.mxu0 0
    %2095 = vmatpush1.bf16.msra.mxu0 0
    %2096 = vmatprep.subr.bf16.mxu0 0
    %2097 = vmatpush1.bf16.msra.mxu0 0
    %2098 = vmatprep.subr.bf16.mxu0 0
    %2099 = vmatpush1.bf16.msra.mxu0 0
    %2100 = vmatprep.subr.bf16.mxu0 0
    %2101 = vmatpush1.bf16.msra.mxu0 0
    %2102 = vmatprep.subr.bf16.mxu0 0
    %2103 = vmatpush1.bf16.msra.mxu0 0
    %2104 = vmatprep.subr.bf16.mxu0 0
    %2105 = vmatpush1.bf16.msra.mxu0 0
    %2106 = vmatprep.subr.bf16.mxu0 0
    %2107 = vmatpush1.bf16.msra.mxu0 0
    %2108 = vmatprep.subr.bf16.mxu0 0
    %2109 = vmatpush1.bf16.msra.mxu0 0
    %2110 = vmatprep.mubr.bf16.mxu0 0
    %2111 = vmatmul.mubr.bf16.gmra.mrb[0].mxu0 %v2076
    %v2112 = vpop.f32.mrb[0].mxu0
    %v2113 = vadd.f32 0.0, %v2112
    %v2114 = vpop.f32.mrb[0].mxu0
    %v2115 = vpop.f32.mrb[0].mxu0
    %v2116 = vadd.f32 0.0, %v2115
    %v2117 = vpop.f32.mrb[0].mxu0
    %2118 = vdwg.mxu0
    %v2123 = vunpack.c.l.b16 %v1947
    %v2124 = vunpack.c.l.b16 %v1948
    %v2125 = vunpack.c.l.b16 %v1949
    %v2126 = vunpack.c.l.b16 %v1950
    %v2127 = vpack.c.b16 %v2124, %v2123
    %v2128 = vpack.c.b16 %v2126, %v2125
    %v2132 = vsel %vm89, %v1933, 0
    %2134 = vmatprep.subr.bf16.mxu0 0
    %2135 = vmatpush1.bf16.msra.mxu0 %v2127
    %2136 = vmatprep.subr.bf16.mxu0 0
    %2137 = vmatpush1.bf16.msra.mxu0 %v2128
    %2138 = vmatprep.subr.bf16.mxu0 0
    %2139 = vmatpush1.bf16.msra.mxu0 0
    %2140 = vmatprep.subr.bf16.mxu0 0
    %2141 = vmatpush1.bf16.msra.mxu0 0
    %2142 = vmatprep.subr.bf16.mxu0 0
    %2143 = vmatpush1.bf16.msra.mxu0 0
    %2144 = vmatprep.subr.bf16.mxu0 0
    %2145 = vmatpush1.bf16.msra.mxu0 0
    %2146 = vmatprep.subr.bf16.mxu0 0
    %2147 = vmatpush1.bf16.msra.mxu0 0
    %2148 = vmatprep.subr.bf16.mxu0 0
    %2149 = vmatpush1.bf16.msra.mxu0 0
    %2150 = vmatprep.subr.bf16.mxu0 0
    %2151 = vmatpush1.bf16.msra.mxu0 0
    %2152 = vmatprep.subr.bf16.mxu0 0
    %2153 = vmatpush1.bf16.msra.mxu0 0
    %2154 = vmatprep.subr.bf16.mxu0 0
    %2155 = vmatpush1.bf16.msra.mxu0 0
    %2156 = vmatprep.subr.bf16.mxu0 0
    %2157 = vmatpush1.bf16.msra.mxu0 0
    %2158 = vmatprep.subr.bf16.mxu0 0
    %2159 = vmatpush1.bf16.msra.mxu0 0
    %2160 = vmatprep.subr.bf16.mxu0 0
    %2161 = vmatpush1.bf16.msra.mxu0 0
    %2162 = vmatprep.subr.bf16.mxu0 0
    %2163 = vmatpush1.bf16.msra.mxu0 0
    %2164 = vmatprep.subr.bf16.mxu0 0
    %2165 = vmatpush1.bf16.msra.mxu0 0
    %2166 = vmatprep.mubr.bf16.mxu0 0
    %2167 = vmatmul.mubr.bf16.gmra.mrb[0].mxu0 %v2132
    %v2168 = vpop.f32.mrb[0].mxu0
    %v2169 = vadd.f32 0.0, %v2168
    %v2170 = vpop.f32.mrb[0].mxu0
    %v2171 = vpop.f32.mrb[0].mxu0
    %v2172 = vadd.f32 0.0, %v2171
    %v2173 = vpop.f32.mrb[0].mxu0
    %2174 = vdwg.mxu0
    %v2175 = vsel %vm89, %v2001, 0.0
    %v2176 = vsel %vm89, %v2057, 0.0
    %v2177 = vadd.f32 %v2175, %v2176
    %v2178 = vsel %vm89, %v2113, 0.0
    %v2179 = vadd.f32 %v2177, %v2178
    %v2180 = vsel %vm89, %v2169, 0.0
    %v2181 = vadd.f32 %v2179, %v2180
    %v2182 = vsel %vm89, %v2004, 0.0
    %v2183 = vsel %vm89, %v2060, 0.0
    %v2184 = vadd.f32 %v2182, %v2183
    %v2185 = vsel %vm89, %v2116, 0.0
    %v2186 = vadd.f32 %v2184, %v2185
    %v2187 = vsel %vm89, %v2172, 0.0
    %v2188 = vadd.f32 %v2186, %v2187
    %v2189 = vadd.f32 %v1221, %v2181
    %v2190 = vadd.f32 %v1222, %v2188
    %s2191 = scalar_lea.vmem %s4, 3
    %v2192 = vld [vmem:[%s2191] sm:$0x1]
    %v2193 = vmul.f32 %v2189, %v2189
    %v2194 = vmul.f32 %v2190, %v2190
    %v2195 = vsel %vm89, %v2193, 0.0
    %2196 = vadd.xlane.f32.xlu0 %v2195
    %v2197 = vpop.xlane.xlu0 %2196
    %v2198 = vsel %vm89, %v2194, 0.0
    %2199 = vadd.xlane.f32.xlu0 %v2198
    %v2200 = vpop.xlane.xlu0 %2199
    %v2201 = vmul.f32 %v2197, %v96
    %v2202 = vmul.f32 %v2200, %v96
    %v2203 = vadd.f32 %v2201, 1e-06
    %v2204 = vadd.f32 %v2202, 1e-06
    %v2205 = vrsqrt.pop %v2203
    %v2206 = vrsqrt.pop %v2204
    %v2207 = vmul.f32 %v2189, %v2205
    %v2208 = vmul.f32 %v2190, %v2206
    %v2210 = vlaneseq
    %v2211 = vshrl.u32 %v2210, 7
    %v2212 = vsub.s32 0, %v2211
    %v2213 = vrot.slane %v2192, %v2212
    %v2215 = vmul.f32 %v2207, %v2213
    %v2216 = vmul.f32 %v2208, %v2213
    %v2217 = vpack.c.bf16 %v2216, %v2215
    %s2218 = scalar_lea.vmem %s5, 16
    %v2219 = vld [vmem:[%s2218] sm:$0xf]
    %v2220 = vld [vmem:[%s2218 + $0x4] sm:$0xf]
    %v2221 = vld [vmem:[%s2218 + $0x8] sm:$0xf]
    %v2222 = vld [vmem:[%s2218 + $0xc] sm:$0xf]
    %v2227 = vunpack.c.l.b16 %v2219
    %v2228 = vunpack.c.l.b16 %v2220
    %v2229 = vunpack.c.l.b16 %v2221
    %v2230 = vunpack.c.l.b16 %v2222
    %v2231 = vpack.c.b16 %v2228, %v2227
    %v2232 = vpack.c.b16 %v2230, %v2229
    %v2236 = vsel %vm89, %v2217, 0
    %2238 = vmatprep.subr.bf16.mxu0 0
    %2239 = vmatpush1.bf16.msra.mxu0 %v2231
    %2240 = vmatprep.subr.bf16.mxu0 0
    %2241 = vmatpush1.bf16.msra.mxu0 %v2232
    %2242 = vmatprep.subr.bf16.mxu0 0
    %2243 = vmatpush1.bf16.msra.mxu0 0
    %2244 = vmatprep.subr.bf16.mxu0 0
    %2245 = vmatpush1.bf16.msra.mxu0 0
    %2246 = vmatprep.subr.bf16.mxu0 0
    %2247 = vmatpush1.bf16.msra.mxu0 0
    %2248 = vmatprep.subr.bf16.mxu0 0
    %2249 = vmatpush1.bf16.msra.mxu0 0
    %2250 = vmatprep.subr.bf16.mxu0 0
    %2251 = vmatpush1.bf16.msra.mxu0 0
    %2252 = vmatprep.subr.bf16.mxu0 0
    %2253 = vmatpush1.bf16.msra.mxu0 0
    %2254 = vmatprep.subr.bf16.mxu0 0
    %2255 = vmatpush1.bf16.msra.mxu0 0
    %2256 = vmatprep.subr.bf16.mxu0 0
    %2257 = vmatpush1.bf16.msra.mxu0 0
    %2258 = vmatprep.subr.bf16.mxu0 0
    %2259 = vmatpush1.bf16.msra.mxu0 0
    %2260 = vmatprep.subr.bf16.mxu0 0
    %2261 = vmatpush1.bf16.msra.mxu0 0
    %2262 = vmatprep.subr.bf16.mxu0 0
    %2263 = vmatpush1.bf16.msra.mxu0 0
    %2264 = vmatprep.subr.bf16.mxu0 0
    %2265 = vmatpush1.bf16.msra.mxu0 0
    %2266 = vmatprep.subr.bf16.mxu0 0
    %2267 = vmatpush1.bf16.msra.mxu0 0
    %2268 = vmatprep.subr.bf16.mxu0 0
    %2269 = vmatpush1.bf16.msra.mxu0 0
    %2270 = vmatprep.mubr.bf16.mxu0 0
    %2271 = vmatmul.mubr.bf16.gmra.mrb[0].mxu0 %v2236
    %v2272 = vpop.f32.mrb[0].mxu0
    %v2273 = vadd.f32 0.0, %v2272
    %v2274 = vpop.f32.mrb[0].mxu0
    %v2275 = vpop.f32.mrb[0].mxu0
    %v2276 = vadd.f32 0.0, %v2275
    %v2277 = vpop.f32.mrb[0].mxu0
    %2278 = vdwg.mxu0
    %v2279 = vmax.f32 %v2273, 0.0
    %v2280 = vmax.f32 %v2276, 0.0
    %v2281 = vpack.c.bf16 %v2280, %v2279
    %s2282 = scalar_lea.vmem %s6, 32
    %v2283 = vld [vmem:[%s2282] sm:$0xf]
    %v2284 = vld [vmem:[%s2282 + $0x4] sm:$0xf]
    %v2285 = vld [vmem:[%s2282 + $0x8] sm:$0xf]
    %v2286 = vld [vmem:[%s2282 + $0xc] sm:$0xf]
    %v2287 = vld [vmem:[%s2282 + $0x10] sm:$0xf]
    %v2288 = vld [vmem:[%s2282 + $0x14] sm:$0xf]
    %v2289 = vld [vmem:[%s2282 + $0x18] sm:$0xf]
    %v2290 = vld [vmem:[%s2282 + $0x1c] sm:$0xf]
    %v2299 = vunpack.c.l.b16 %v2283
    %v2300 = vunpack.c.l.b16 %v2284
    %v2301 = vunpack.c.l.b16 %v2285
    %v2302 = vunpack.c.l.b16 %v2286
    %v2303 = vunpack.c.l.b16 %v2287
    %v2304 = vunpack.c.l.b16 %v2288
    %v2305 = vunpack.c.l.b16 %v2289
    %v2306 = vunpack.c.l.b16 %v2290
    %v2307 = vpack.c.b16 %v2300, %v2299
    %v2308 = vpack.c.b16 %v2302, %v2301
    %v2309 = vpack.c.b16 %v2304, %v2303
    %v2310 = vpack.c.b16 %v2306, %v2305
    %v2316 = vsel %vm1176, %v2281, 0
    %2318 = vmatprep.subr.bf16.mxu0 0
    %2319 = vmatpush1.bf16.msra.mxu0 %v2307
    %2320 = vmatprep.subr.bf16.mxu0 0
    %2321 = vmatpush1.bf16.msra.mxu0 %v2308
    %2322 = vmatprep.subr.bf16.mxu0 0
    %2323 = vmatpush1.bf16.msra.mxu0 %v2309
    %2324 = vmatprep.subr.bf16.mxu0 0
    %2325 = vmatpush1.bf16.msra.mxu0 %v2310
    %2326 = vmatprep.subr.bf16.mxu0 0
    %2327 = vmatpush1.bf16.msra.mxu0 0
    %2328 = vmatprep.subr.bf16.mxu0 0
    %2329 = vmatpush1.bf16.msra.mxu0 0
    %2330 = vmatprep.subr.bf16.mxu0 0
    %2331 = vmatpush1.bf16.msra.mxu0 0
    %2332 = vmatprep.subr.bf16.mxu0 0
    %2333 = vmatpush1.bf16.msra.mxu0 0
    %2334 = vmatprep.subr.bf16.mxu0 0
    %2335 = vmatpush1.bf16.msra.mxu0 0
    %2336 = vmatprep.subr.bf16.mxu0 0
    %2337 = vmatpush1.bf16.msra.mxu0 0
    %2338 = vmatprep.subr.bf16.mxu0 0
    %2339 = vmatpush1.bf16.msra.mxu0 0
    %2340 = vmatprep.subr.bf16.mxu0 0
    %2341 = vmatpush1.bf16.msra.mxu0 0
    %2342 = vmatprep.subr.bf16.mxu0 0
    %2343 = vmatpush1.bf16.msra.mxu0 0
    %2344 = vmatprep.subr.bf16.mxu0 0
    %2345 = vmatpush1.bf16.msra.mxu0 0
    %2346 = vmatprep.subr.bf16.mxu0 0
    %2347 = vmatpush1.bf16.msra.mxu0 0
    %2348 = vmatprep.subr.bf16.mxu0 0
    %2349 = vmatpush1.bf16.msra.mxu0 0
    %2350 = vmatprep.mubr.bf16.mxu0 0
    %2351 = vmatmul.mubr.bf16.gmra.mrb[0].mxu0 %v2316
    %v2352 = vpop.f32.mrb[0].mxu0
    %v2353 = vadd.f32 0.0, %v2352
    %v2354 = vpop.f32.mrb[0].mxu0
    %v2355 = vpop.f32.mrb[0].mxu0
    %v2356 = vadd.f32 0.0, %v2355
    %v2357 = vpop.f32.mrb[0].mxu0
    %2358 = vdwg.mxu0
    %v2359 = vadd.f32 %v2189, %v2353
    %v2360 = vadd.f32 %v2190, %v2356
    %s2361 = scalar_lea.vmem %s4, 4
    %v2362 = vld [vmem:[%s2361] sm:$0x1]
    %v2363 = vmul.f32 %v2359, %v2359
    %v2364 = vmul.f32 %v2360, %v2360
    %v2365 = vsel %vm89, %v2363, 0.0
    %2366 = vadd.xlane.f32.xlu0 %v2365
    %v2367 = vpop.xlane.xlu0 %2366
    %v2368 = vsel %vm89, %v2364, 0.0
    %2369 = vadd.xlane.f32.xlu0 %v2368
    %v2370 = vpop.xlane.xlu0 %2369
    %v2371 = vmul.f32 %v2367, %v96
    %v2372 = vmul.f32 %v2370, %v96
    %v2373 = vadd.f32 %v2371, 1e-06
    %v2374 = vadd.f32 %v2372, 1e-06
    %v2375 = vrsqrt.pop %v2373
    %v2376 = vrsqrt.pop %v2374
    %v2377 = vmul.f32 %v2359, %v2375
    %v2378 = vmul.f32 %v2360, %v2376
    %v2380 = vlaneseq
    %v2381 = vshrl.u32 %v2380, 7
    %v2382 = vsub.s32 0, %v2381
    %v2383 = vrot.slane %v2362, %v2382
    %v2385 = vmul.f32 %v2377, %v2383
    %v2386 = vmul.f32 %v2378, %v2383
    %v2387 = vld [vmem:[%s7] sm:$0x1]
    %s2388 = sld [smem:[#allocation2]]
    %v2389 = vstv %s2388
    %v2391 = vsel %vm89, %v2387, 0
    %v2394 = vsel %vm89, %v2385, 0
    %v2397 = vsel %vm89, %v2386, 0
    %2399 = vmatprep.subr.mxu0 0.0
    %2400 = vmatpush1.xpose.msra.mxu0 %v2394
    %2401 = vmatprep.subr.mxu0 0.0
    %2402 = vmatpush1.xpose.msra.mxu0 %v2397
    %2403 = vmatprep.subr.mxu0 0.0
    %2404 = vmatpush1.xpose.msra.mxu0 0.0
    %2405 = vmatprep.subr.mxu0 0.0
    %2406 = vmatpush1.xpose.msra.mxu0 0.0
    %2407 = vmatprep.subr.mxu0 0.0
    %2408 = vmatpush1.xpose.msra.mxu0 0.0
    %2409 = vmatprep.subr.mxu0 0.0
    %2410 = vmatpush1.xpose.msra.mxu0 0.0
    %2411 = vmatprep.subr.mxu0 0.0
    %2412 = vmatpush1.xpose.msra.mxu0 0.0
    %2413 = vmatprep.subr.mxu0 0.0
    %2414 = vmatpush1.xpose.msra.mxu0 0.0
    %2415 = vmatprep.subr.mxu0 0.0
    %2416 = vmatpush1.xpose.msra.mxu0 0.0
    %2417 = vmatprep.subr.mxu0 0.0
    %2418 = vmatpush1.xpose.msra.mxu0 0.0
    %2419 = vmatprep.subr.mxu0 0.0
    %2420 = vmatpush1.xpose.msra.mxu0 0.0
    %2421 = vmatprep.subr.mxu0 0.0
    %2422 = vmatpush1.xpose.msra.mxu0 0.0
    %2423 = vmatprep.subr.mxu0 0.0
    %2424 = vmatpush1.xpose.msra.mxu0 0.0
    %2425 = vmatprep.subr.mxu0 0.0
    %2426 = vmatpush1.xpose.msra.mxu0 0.0
    %2427 = vmatprep.subr.mxu0 0.0
    %2428 = vmatpush1.xpose.msra.mxu0 0.0
    %2429 = vmatprep.subr.mxu0 0.0
    %2430 = vmatpush1.xpose.msra.mxu0 0.0
    %2431 = vmatprep.subr.mxu0 0.0
    %2432 = vmatpush1.xpose.msra.mxu0 0.0
    %2433 = vmatprep.subr.mxu0 0.0
    %2434 = vmatpush1.xpose.msra.mxu0 0.0
    %2435 = vmatprep.subr.mxu0 0.0
    %2436 = vmatpush1.xpose.msra.mxu0 0.0
    %2437 = vmatprep.subr.mxu0 0.0
    %2438 = vmatpush1.xpose.msra.mxu0 0.0
    %2439 = vmatprep.subr.mxu0 0.0
    %2440 = vmatpush1.xpose.msra.mxu0 0.0
    %2441 = vmatprep.subr.mxu0 0.0
    %2442 = vmatpush1.xpose.msra.mxu0 0.0
    %2443 = vmatprep.subr.mxu0 0.0
    %2444 = vmatpush1.xpose.msra.mxu0 0.0
    %2445 = vmatprep.subr.mxu0 0.0
    %2446 = vmatpush1.xpose.msra.mxu0 0.0
    %2447 = vmatprep.subr.mxu0 0.0
    %2448 = vmatpush1.xpose.msra.mxu0 0.0
    %2449 = vmatprep.subr.mxu0 0.0
    %2450 = vmatpush1.xpose.msra.mxu0 0.0
    %2451 = vmatprep.subr.mxu0 0.0
    %2452 = vmatpush1.xpose.msra.mxu0 0.0
    %2453 = vmatprep.subr.mxu0 0.0
    %2454 = vmatpush1.xpose.msra.mxu0 0.0
    %2455 = vmatprep.subr.mxu0 0.0
    %2456 = vmatpush1.xpose.msra.mxu0 0.0
    %2457 = vmatprep.subr.mxu0 0.0
    %2458 = vmatpush1.xpose.msra.mxu0 0.0
    %2459 = vmatprep.subr.mxu0 0.0
    %2460 = vmatpush1.xpose.msra.mxu0 0.0
    %2461 = vmatprep.subr.mxu0 0.0
    %2462 = vmatpush1.xpose.msra.mxu0 0.0
    %2463 = vmatprep.mubr.f32.mxu0 0.0
    %2464 = vmatmul.mubr.f32.gmra.mrb[0].mxu0 %v2391
    %v2465 = vpop.f32.mrb[0].mxu0
    %v2466 = vadd.f32 %v2389, %v2465
    %v2467 = vpop.f32.mrb[0].mxu0
    %2468 = vdwg.mxu0
    %vm2469 = vcmask 122880
    %2470 = vst.msk [vmem:[#allocation9] sm:$0x1] %vm2469, %v2466
    // Predicated region
    $region50: #{tpu_custom_call.1} parent=1 // pred_check
      _
    $region51: #{tpu_custom_call.1} parent=1 // pred_check_branch
      %2472 = sbr.rel (0) target = $region53
    $region52: #{tpu_custom_call.1} parent=1 // pred_region
      %s2474 = ssub.s32 16, 16
      %2475 = vsyncadd [#allocation5], %s2474
      %s2477 = sshll.u32 [#allocation9], 4
      %s2478 = int_to_ptr.vmem [resolvable:$true] %s2477
      %2480 = dma.vmem_to_hbm [thread:$0]  %s2478, 16, %s9, [#allocation5]
    $region53: #{tpu_custom_call.1} parent=1 // pred_fallthru
      _
    // Predicated region
    $region54: #{tpu_custom_call.1} parent=1 // pred_check
      _
    $region55: #{tpu_custom_call.1} parent=1 // pred_check_branch
      %2482 = sbr.rel (0) target = $region57
    $region56: #{tpu_custom_call.1} parent=1 // pred_region
      %2483 = dma.done [#allocation5], 16
    $region57: #{tpu_custom_call.1} parent=1 // pred_fallthru
      _
    %2484 = vsyncpa [#allocation4], 1
    %2485 = vsyncpa [#allocation7], 1
    %2486 = vsyncpa [#allocation5], 1

</llo_original>
